<compile_context>
chip_gen: v7x
topology: tpu7x:2x2x1
jax: 0.10.0
libtpu: 0.0.40
codegen_flags: <defaults>
</compile_context>

<pallas_src>
import jax
import jax.numpy as jnp
from jax.experimental import pallas as pl
from jax.experimental.pallas import tpu as pltpu

# ---------------- config (small synthetic BERT) ----------------
VOCAB = 100
TYPE_VOCAB = 2
MAX_POS = 64
HIDDEN = 32
N_HEADS = 4
HEAD_DIM = HIDDEN // N_HEADS
INTERMEDIATE = 64
N_LAYERS = 2
BATCH = 2
SEQ = 8
LN_EPS = 1e-12
NEG = -1e9

BS = BATCH * SEQ                                   # activation rows
HBS = N_HEADS * BATCH * SEQ                        # head-major attention rows
EMB_ROWS = VOCAB + MAX_POS + TYPE_VOCAB            # 166
EMB_ROWS_PAD = ((EMB_ROWS + 7) // 8) * 8           # 168

# ---- packed parameter-bank layout (shared by packer and kernel) ----
# mat bank (bf16, 96 lanes): all matmul weights stacked on rows
MAT_W = 96
QKVW_OFF = 0                                       # L x (H, 3H) head-interleaved, q pre-scaled
AOW_OFF = QKVW_OFF + N_LAYERS * HIDDEN             # L x (H, H)
IW_OFF = AOW_OFF + N_LAYERS * HIDDEN               # L x (H, I)
OW_OFF = IW_OFF + N_LAYERS * HIDDEN                # L x (I, H)
POOLW_OFF = OW_OFF + N_LAYERS * INTERMEDIATE       # (H, H)
MAT_ROWS = POOLW_OFF + HIDDEN                      # 352

# vec bank (f32, 128 lanes): one row per bias / LN vector
VEC_W = 128
EMB_LN_G, EMB_LN_B = 0, 1
LAYER_VEC_OFF = 2
LAYER_VEC_STRIDE = 8          # qkv_b, ao_b, ln1_g, ln1_b, i_b, o_b, ln2_g, ln2_b
POOL_B_ROW = LAYER_VEC_OFF + N_LAYERS * LAYER_VEC_STRIDE
FC_W_ROW = POOL_B_ROW + 1
FC_B_ROW = FC_W_ROW + 1
VEC_ROWS = ((FC_B_ROW + 1 + 7) // 8) * 8           # 24


# ---------------- in-kernel helpers (values, not refs) ----------------
def _erf(z):
    # Abramowitz & Stegun 7.1.26 rational approximation, |abs err| < 1.5e-7.
    p = 0.3275911
    a1, a2, a3, a4, a5 = 0.254829592, -0.284496736, 1.421413741, -1.453152027, 1.061405429
    sgn = jnp.where(z < 0.0, -1.0, 1.0)
    az = jnp.abs(z)
    t = pl.reciprocal(1.0 + p * az, approx=False)   # exact: keeps the 1.5e-7 bound
    poly = ((((a5 * t + a4) * t + a3) * t + a2) * t + a1) * t
    return sgn * (1.0 - poly * jnp.exp(-az * az))


def _gelu_exact(x):
    # erf-based GELU (matches HF BERT's exact gelu).
    return 0.5 * x * (1.0 + _erf(x * 0.7071067811865476))


def _layernorm(x, g, b):
    mean = jnp.mean(x, axis=-1, keepdims=True)
    var = jnp.mean((x - mean) ** 2, axis=-1, keepdims=True)
    return (x - mean) * jax.lax.rsqrt(var + LN_EPS) * g + b


# ---------------- the single fused kernel ----------------
def _fused_bert_kernel(ids_ref,      # (B*S, 3) int32: word | VOCAB+pos | VOCAB+MAX_POS+type
                       emb_tab_ref,  # (EMB_ROWS_PAD, H) f32 packed embedding table
                       bias_ref,     # (nH*B*S, nH*B*S) f32 additive attention bias
                       vec_ref,      # (VEC_ROWS, 128) f32 bias / LN bank
                       mat_ref,      # (MAT_ROWS, 96) bf16 matmul-weight bank
                       o_ref,        # (B*S, 128) f32 lane-dense output slab
                       qkv_slab,     # scratch (nH*B*S, 3*Dh) bf16, head-major rows (h, b, s)
                       ctx_slab):    # scratch (B*S, H) f32
    f32, bf16 = jnp.float32, jnp.bfloat16

    def vrow(r, w):
        return vec_ref[r:r + 1, 0:w]

    # ---- embeddings: one combined one-hot -> single MXU pass over the packed table ----
    iota = jax.lax.broadcasted_iota(jnp.int32, (BS, EMB_ROWS_PAD), 1)
    onehot = (iota == ids_ref[:, 0:1]).astype(f32)
    onehot = onehot + (iota == ids_ref[:, 1:2]).astype(f32)
    onehot = onehot + (iota == ids_ref[:, 2:3]).astype(f32)
    emb = jnp.dot(onehot, emb_tab_ref[...], preferred_element_type=f32)        # (B*S, H)
    x = _layernorm(emb, vrow(EMB_LN_G, HIDDEN), vrow(EMB_LN_B, HIDDEN))

    for l in range(N_LAYERS):
        vb = LAYER_VEC_OFF + l * LAYER_VEC_STRIDE

        # ---- fused, head-interleaved QKV projection (softmax scale folded into q) ----
        qkv_w = mat_ref[QKVW_OFF + l * HIDDEN:QKVW_OFF + (l + 1) * HIDDEN, 0:3 * HIDDEN]
        qkv = jnp.dot(x.astype(bf16), qkv_w,
                      preferred_element_type=f32) + vrow(vb + 0, 3 * HIDDEN)   # (B*S, 3H)

        # ---- re-layout to head-major rows (h, b, s): 4 static scratch stores ----
        for h in range(N_HEADS):
            qkv_slab[h * BS:(h + 1) * BS, :] = (
                qkv[:, h * 3 * HEAD_DIM:(h + 1) * 3 * HEAD_DIM].astype(bf16))
        qh = qkv_slab[:, 0:HEAD_DIM]
        kh = qkv_slab[:, HEAD_DIM:2 * HEAD_DIM]
        vh = qkv_slab[:, 2 * HEAD_DIM:3 * HEAD_DIM]

        # ---- ONE QK^T, ONE masked softmax, ONE PV for all (batch, head) pairs ----
        s = jax.lax.dot_general(qh, kh, (((1,), (1,)), ((), ())),
                                preferred_element_type=f32)                    # (HBS, HBS)
        s = s + bias_ref[...]
        m = jnp.max(s, axis=-1, keepdims=True)
        p = jnp.exp(s - m)
        p = p * pl.reciprocal(jnp.sum(p, axis=-1, keepdims=True), approx=True)
        ctx_h = jnp.dot(p.astype(bf16), vh, preferred_element_type=f32)        # (HBS, Dh)

        # ---- back to (b*s, H) rows: 4 static scratch stores ----
        for h in range(N_HEADS):
            ctx_slab[:, h * HEAD_DIM:(h + 1) * HEAD_DIM] = ctx_h[h * BS:(h + 1) * BS, :]

        # ---- attention output proj + residual + LN1 ----
        ao_w = mat_ref[AOW_OFF + l * HIDDEN:AOW_OFF + (l + 1) * HIDDEN, 0:HIDDEN]
        attn_out = jnp.dot(ctx_slab[...].astype(bf16), ao_w,
                           preferred_element_type=f32) + vrow(vb + 1, HIDDEN)
        h1 = _layernorm(x + attn_out, vrow(vb + 2, HIDDEN), vrow(vb + 3, HIDDEN))

        # ---- FFN (exact-erf GELU) + residual + LN2 ----
        i_w = mat_ref[IW_OFF + l * HIDDEN:IW_OFF + (l + 1) * HIDDEN, 0:INTERMEDIATE]
        inter = _gelu_exact(jnp.dot(h1.astype(bf16), i_w, preferred_element_type=f32)
                            + vrow(vb + 4, INTERMEDIATE))
        o_w = mat_ref[OW_OFF + l * INTERMEDIATE:OW_OFF + (l + 1) * INTERMEDIATE, 0:HIDDEN]
        ffn = jnp.dot(inter.astype(bf16), o_w,
                      preferred_element_type=f32) + vrow(vb + 5, HIDDEN)
        x = _layernorm(h1 + ffn, vrow(vb + 6, HIDDEN), vrow(vb + 7, HIDDEN))

    # ---- pooler on ALL rows (extra rows are MXU-free; CLS rows selected outside) ----
    pool_w = mat_ref[POOLW_OFF:POOLW_OFF + HIDDEN, 0:HIDDEN]
    pooled = jnp.tanh(jnp.dot(x.astype(bf16), pool_w, preferred_element_type=f32)
                      + vrow(POOL_B_ROW, HIDDEN))
    # 1-wide similarity head as a lane reduction (no 1-lane matmul / narrow store)
    logit = (jnp.sum(pooled * vrow(FC_W_ROW, HIDDEN), axis=-1, keepdims=True)
             + vec_ref[FC_B_ROW:FC_B_ROW + 1, 0:1])
    sim = jax.nn.sigmoid(logit)                                                 # (B*S, 1)
    o_ref[...] = jnp.broadcast_to(sim, o_ref.shape).astype(o_ref.dtype)


# ---------------- params: natural layout, then packed into the kernel banks ----------------
def init_params(key):
    keys = jax.random.split(key, 20)

    def nrm(k, shape, scale=0.02):
        return scale * jax.random.normal(k, shape, dtype=jnp.float32)

    L, H, I = N_LAYERS, HIDDEN, INTERMEDIATE
    return {
        "word_emb": nrm(keys[0], (VOCAB, H)),
        "pos_emb": nrm(keys[1], (MAX_POS, H)),
        "type_emb": nrm(keys[2], (TYPE_VOCAB, H)),
        "emb_ln_g": jnp.ones((H,), jnp.float32), "emb_ln_b": jnp.zeros((H,), jnp.float32),
        "q_w": nrm(keys[3], (L, H, H)), "q_b": nrm(keys[4], (L, H)),
        "k_w": nrm(keys[5], (L, H, H)), "k_b": nrm(keys[6], (L, H)),
        "v_w": nrm(keys[7], (L, H, H)), "v_b": nrm(keys[8], (L, H)),
        "ao_w": nrm(keys[9], (L, H, H)), "ao_b": nrm(keys[10], (L, H)),
        "ln1_g": jnp.ones((L, H), jnp.float32), "ln1_b": jnp.zeros((L, H), jnp.float32),
        "i_w": nrm(keys[11], (L, H, I)), "i_b": nrm(keys[12], (L, I)),
        "o_w": nrm(keys[13], (L, I, H)), "o_b": nrm(keys[14], (L, H)),
        "ln2_g": jnp.ones((L, H), jnp.float32), "ln2_b": jnp.zeros((L, H), jnp.float32),
        "pool_w": nrm(keys[15], (H, H)), "pool_b": nrm(keys[16], (H,)),
        "fc_w": nrm(keys[17], (H,)), "fc_b": nrm(keys[18], (1,)),
    }


def pack_params(p):
    H, I, Dh = HIDDEN, INTERMEDIATE, HEAD_DIM
    scale = 1.0 / float(Dh) ** 0.5

    # embedding table: word | pos | type stacked on rows, padded to a sublane multiple
    emb_tab = jnp.concatenate([p["word_emb"], p["pos_emb"], p["type_emb"]], axis=0)
    emb_tab = jnp.pad(emb_tab, ((0, EMB_ROWS_PAD - EMB_ROWS), (0, 0)))

    def row(v):
        v = jnp.asarray(v, jnp.float32).reshape(-1)
        return jnp.pad(v, (0, VEC_W - v.shape[0]))[None, :]

    def head_w(qw, kw, vw):          # (H,H)x3 -> (H,3H) grouped [q_h|k_h|v_h] per head
        return jnp.concatenate(
            [jnp.concatenate([qw[:, h * Dh:(h + 1) * Dh], kw[:, h * Dh:(h + 1) * Dh],
                              vw[:, h * Dh:(h + 1) * Dh]], axis=1) for h in range(N_HEADS)],
            axis=1)

    def head_b(qb, kb, vb):          # (H,)x3 -> (3H,) grouped per head
        return jnp.concatenate(
            [jnp.concatenate([qb[h * Dh:(h + 1) * Dh], kb[h * Dh:(h + 1) * Dh],
                              vb[h * Dh:(h + 1) * Dh]]) for h in range(N_HEADS)])

    vec_rows = [row(p["emb_ln_g"]), row(p["emb_ln_b"])]
    qkv_ws, ao_ws, i_ws, o_ws = [], [], [], []
    for l in range(N_LAYERS):
        qkv_ws.append(head_w(p["q_w"][l] * scale, p["k_w"][l], p["v_w"][l]))
        ao_ws.append(p["ao_w"][l]); i_ws.append(p["i_w"][l]); o_ws.append(p["o_w"][l])
        vec_rows += [row(head_b(p["q_b"][l] * scale, p["k_b"][l], p["v_b"][l])),
                     row(p["ao_b"][l]),
                     row(p["ln1_g"][l]), row(p["ln1_b"][l]),
                     row(p["i_b"][l]), row(p["o_b"][l]),
                     row(p["ln2_g"][l]), row(p["ln2_b"][l])]
    vec_rows += [row(p["pool_b"]), row(p["fc_w"]), row(p["fc_b"])]
    vec_bank = jnp.concatenate(vec_rows, axis=0)
    vec_bank = jnp.pad(vec_bank, ((0, VEC_ROWS - vec_bank.shape[0]), (0, 0)))

    def mat(m):
        m = jnp.asarray(m, jnp.float32)
        return jnp.pad(m, ((0, 0), (0, MAT_W - m.shape[1])))

    mat_bank = jnp.concatenate(
        [mat(w) for w in qkv_ws] + [mat(w) for w in ao_ws] +
        [mat(w) for w in i_ws] + [mat(w) for w in o_ws] + [mat(p["pool_w"])],
        axis=0).astype(jnp.bfloat16)
    assert mat_bank.shape == (MAT_ROWS, MAT_W)

    return {"emb_tab": emb_tab, "vec_bank": vec_bank, "mat_bank": mat_bank}


# ---------------- forward: tiny input prep + ONE pallas_call ----------------
def sentence_similarity_forward(packed, input_ids, token_type_ids, attention_mask):
    b, s = input_ids.shape
    assert (b, s) == (BATCH, SEQ)

    # packed ids with table offsets (word | pos | type)
    word = input_ids.reshape(-1)
    pos = jnp.tile(jnp.arange(s, dtype=jnp.int32), b) + VOCAB
    typ = token_type_ids.reshape(-1) + (VOCAB + MAX_POS)
    ids = jnp.stack([word, pos, typ], axis=1).astype(jnp.int32)                # (B*S, 3)

    # full additive attention bias for head-major rows (h, b, s):
    # block-diagonal over (head, batch) groups + padding mask on key columns
    pad_col = jnp.tile(((1.0 - attention_mask.astype(jnp.float32)) * NEG).reshape(-1), N_HEADS)
    group = jnp.repeat(jnp.arange(N_HEADS * b, dtype=jnp.int32), s)
    same = group[:, None] == group[None, :]
    attn_bias = jnp.where(same, pad_col[None, :], NEG)                         # (HBS, HBS)

    slab = pl.pallas_call(
        _fused_bert_kernel,
        out_shape=jax.ShapeDtypeStruct((b * s, 128), jnp.float32),
        scratch_shapes=[pltpu.VMEM((HBS, 3 * HEAD_DIM), jnp.bfloat16),   # head-major qkv
                        pltpu.VMEM((b * s, HIDDEN), jnp.float32)],       # context
    )(ids, packed["emb_tab"], attn_bias, packed["vec_bank"], packed["mat_bank"])
    return slab[0::s, 0:1]                                                     # (B, 1) CLS sims


if __name__ == "__main__":
    key = jax.random.PRNGKey(0)
    pkey, dkey = jax.random.split(key)
    params = init_params(pkey)
    packed = pack_params(params)

    input_ids = jax.random.randint(dkey, (BATCH, SEQ), 0, VOCAB, dtype=jnp.int32)
    token_type_ids = jnp.zeros((BATCH, SEQ), jnp.int32)
    attention_mask = jnp.ones((BATCH, SEQ), jnp.int32)

    fwd = jax.jit(sentence_similarity_forward)
    out = jax.block_until_ready(fwd(packed, input_ids, token_type_ids, attention_mask))
    assert out.shape == (BATCH, 1) and out.dtype == jnp.float32
    assert bool(jnp.all((out >= 0.0) & (out <= 1.0)))
    print("KERNEL_OK")
</pallas_src>

<mosaic_0001>
module attributes {stable_mosaic.version = 11 : i64} {
  func.func @_fused_bert_kernel(%arg0: memref<16x3xi32, #tpu.memory_space<vmem>>, %arg1: memref<168x32xf32, #tpu.memory_space<vmem>>, %arg2: memref<64x64xf32, #tpu.memory_space<vmem>>, %arg3: memref<24x128xf32, #tpu.memory_space<vmem>>, %arg4: memref<352x96xbf16, #tpu.memory_space<vmem>>, %arg5: memref<16x128xf32, #tpu.memory_space<vmem>>, %arg6: memref<64x24xbf16, #tpu.memory_space<vmem>>, %arg7: memref<16x32xf32, #tpu.memory_space<vmem>>) attributes {dimension_semantics = [], scalar_prefetch = 0 : i64, scratch_operands = 2 : i64, tpu.core_type = #tpu.core_type<tc>} {
    %0 = tpu.iota {dimensions = array<i32: 1>} : vector<16x168xi32>
    %c0 = arith.constant 0 : index
    %c0_0 = arith.constant 0 : index
    %1 = vector.load %arg0[%c0, %c0_0] : memref<16x3xi32, #tpu.memory_space<vmem>>, vector<16x1xi32>
    %2 = vector.broadcast %1 : vector<16x1xi32> to vector<16x168xi32>
    %3 = arith.cmpi eq, %0, %2 : vector<16x168xi32>
    %4 = arith.extui %3 : vector<16x168xi1> to vector<16x168xi32>
    %5 = arith.sitofp %4 : vector<16x168xi32> to vector<16x168xf32>
    %c0_1 = arith.constant 0 : index
    %c1 = arith.constant 1 : index
    %6 = vector.load %arg0[%c0_1, %c1] : memref<16x3xi32, #tpu.memory_space<vmem>>, vector<16x1xi32>
    %7 = vector.broadcast %6 : vector<16x1xi32> to vector<16x168xi32>
    %8 = arith.cmpi eq, %0, %7 : vector<16x168xi32>
    %9 = arith.extui %8 : vector<16x168xi1> to vector<16x168xi32>
    %10 = arith.sitofp %9 : vector<16x168xi32> to vector<16x168xf32>
    %11 = arith.addf %5, %10 : vector<16x168xf32>
    %c0_2 = arith.constant 0 : index
    %c2 = arith.constant 2 : index
    %12 = vector.load %arg0[%c0_2, %c2] : memref<16x3xi32, #tpu.memory_space<vmem>>, vector<16x1xi32>
    %13 = vector.broadcast %12 : vector<16x1xi32> to vector<16x168xi32>
    %14 = arith.cmpi eq, %0, %13 : vector<16x168xi32>
    %15 = arith.extui %14 : vector<16x168xi1> to vector<16x168xi32>
    %16 = arith.sitofp %15 : vector<16x168xi32> to vector<16x168xf32>
    %17 = arith.addf %11, %16 : vector<16x168xf32>
    %c0_3 = arith.constant 0 : index
    %c0_4 = arith.constant 0 : index
    %18 = vector.load %arg1[%c0_3, %c0_4] : memref<168x32xf32, #tpu.memory_space<vmem>>, vector<168x32xf32>
    %cst = arith.constant dense<0.000000e+00> : vector<16x32xf32>
    %19 = tpu.matmul %17, %18, %cst {dimension_numbers = #tpu.dot_dimension_numbers<[1], [0], [0], [1], [0, 0, 1, 1], [], []>} : vector<16x168xf32>, vector<168x32xf32>, vector<16x32xf32> -> vector<16x32xf32>
    %c0_5 = arith.constant 0 : index
    %c0_6 = arith.constant 0 : index
    %20 = vector.load %arg3[%c0_5, %c0_6] : memref<24x128xf32, #tpu.memory_space<vmem>>, vector<1x32xf32>
    %c1_7 = arith.constant 1 : index
    %c0_8 = arith.constant 0 : index
    %21 = vector.load %arg3[%c1_7, %c0_8] : memref<24x128xf32, #tpu.memory_space<vmem>>, vector<1x32xf32>
    %cst_9 = arith.constant dense<0.000000e+00> : vector<16xf32>
    %22 = vector.multi_reduction <add>, %19, %cst_9 [1] : vector<16x32xf32> to vector<16xf32>
    %23 = vector.shape_cast %22 : vector<16xf32> to vector<16x1xf32>
    %cst_10 = arith.constant 3.200000e+01 : f32
    %24 = vector.broadcast %cst_10 : f32 to vector<16x1xf32>
    %25 = arith.divf %23, %24 : vector<16x1xf32>
    %26 = vector.broadcast %25 : vector<16x1xf32> to vector<16x32xf32>
    %27 = arith.subf %19, %26 : vector<16x32xf32>
    %28 = arith.mulf %27, %27 : vector<16x32xf32>
    %cst_11 = arith.constant dense<0.000000e+00> : vector<16xf32>
    %29 = vector.multi_reduction <add>, %28, %cst_11 [1] : vector<16x32xf32> to vector<16xf32>
    %30 = vector.shape_cast %29 : vector<16xf32> to vector<16x1xf32>
    %cst_12 = arith.constant 3.200000e+01 : f32
    %31 = vector.broadcast %cst_12 : f32 to vector<16x1xf32>
    %32 = arith.divf %30, %31 : vector<16x1xf32>
    %33 = vector.broadcast %25 : vector<16x1xf32> to vector<16x32xf32>
    %34 = arith.subf %19, %33 : vector<16x32xf32>
    %cst_13 = arith.constant 9.99999996E-13 : f32
    %35 = vector.broadcast %cst_13 : f32 to vector<16x1xf32>
    %36 = arith.addf %32, %35 : vector<16x1xf32>
    %37 = math.rsqrt %36 : vector<16x1xf32>
    %38 = vector.broadcast %37 : vector<16x1xf32> to vector<16x32xf32>
    %39 = arith.mulf %34, %38 : vector<16x32xf32>
    %40 = vector.broadcast %20 : vector<1x32xf32> to vector<16x32xf32>
    %41 = arith.mulf %39, %40 : vector<16x32xf32>
    %42 = vector.broadcast %21 : vector<1x32xf32> to vector<16x32xf32>
    %43 = arith.addf %41, %42 : vector<16x32xf32>
    %c0_14 = arith.constant 0 : index
    %c0_15 = arith.constant 0 : index
    %44 = vector.load %arg4[%c0_14, %c0_15] : memref<352x96xbf16, #tpu.memory_space<vmem>>, vector<32x96xbf16>
    %45 = arith.truncf %43 : vector<16x32xf32> to vector<16x32xbf16>
    %cst_16 = arith.constant dense<0.000000e+00> : vector<16x96xf32>
    %46 = tpu.matmul %45, %44, %cst_16 {dimension_numbers = #tpu.dot_dimension_numbers<[1], [0], [0], [1], [0, 0, 1, 1], [], []>} : vector<16x32xbf16>, vector<32x96xbf16>, vector<16x96xf32> -> vector<16x96xf32>
    %c2_17 = arith.constant 2 : index
    %c0_18 = arith.constant 0 : index
    %47 = vector.load %arg3[%c2_17, %c0_18] : memref<24x128xf32, #tpu.memory_space<vmem>>, vector<1x96xf32>
    %48 = vector.broadcast %47 : vector<1x96xf32> to vector<16x96xf32>
    %49 = arith.addf %46, %48 : vector<16x96xf32>
    %50 = vector.extract_strided_slice %49 {offsets = [0, 0], sizes = [16, 24], strides = [1, 1]} : vector<16x96xf32> to vector<16x24xf32>
    %51 = arith.truncf %50 : vector<16x24xf32> to vector<16x24xbf16>
    %c0_19 = arith.constant 0 : index
    %c0_20 = arith.constant 0 : index
    %52 = vector.load %arg6[%c0_19, %c0_20] : memref<64x24xbf16, #tpu.memory_space<vmem>>, vector<16x24xbf16>
    tpu.vector_store %arg6[%c0_19, %c0_20], %51 {strides = array<i32>} : memref<64x24xbf16, #tpu.memory_space<vmem>>, vector<16x24xbf16>,
    %53 = vector.extract_strided_slice %49 {offsets = [0, 24], sizes = [16, 24], strides = [1, 1]} : vector<16x96xf32> to vector<16x24xf32>
    %54 = arith.truncf %53 : vector<16x24xf32> to vector<16x24xbf16>
    %c16 = arith.constant 16 : index
    %c0_21 = arith.constant 0 : index
    %55 = vector.load %arg6[%c16, %c0_21] : memref<64x24xbf16, #tpu.memory_space<vmem>>, vector<16x24xbf16>
    tpu.vector_store %arg6[%c16, %c0_21], %54 {strides = array<i32>} : memref<64x24xbf16, #tpu.memory_space<vmem>>, vector<16x24xbf16>,
    %56 = vector.extract_strided_slice %49 {offsets = [0, 48], sizes = [16, 24], strides = [1, 1]} : vector<16x96xf32> to vector<16x24xf32>
    %57 = arith.truncf %56 : vector<16x24xf32> to vector<16x24xbf16>
    %c32 = arith.constant 32 : index
    %c0_22 = arith.constant 0 : index
    %58 = vector.load %arg6[%c32, %c0_22] : memref<64x24xbf16, #tpu.memory_space<vmem>>, vector<16x24xbf16>
    tpu.vector_store %arg6[%c32, %c0_22], %57 {strides = array<i32>} : memref<64x24xbf16, #tpu.memory_space<vmem>>, vector<16x24xbf16>,
    %59 = vector.extract_strided_slice %49 {offsets = [0, 72], sizes = [16, 24], strides = [1, 1]} : vector<16x96xf32> to vector<16x24xf32>
    %60 = arith.truncf %59 : vector<16x24xf32> to vector<16x24xbf16>
    %c48 = arith.constant 48 : index
    %c0_23 = arith.constant 0 : index
    %61 = vector.load %arg6[%c48, %c0_23] : memref<64x24xbf16, #tpu.memory_space<vmem>>, vector<16x24xbf16>
    tpu.vector_store %arg6[%c48, %c0_23], %60 {strides = array<i32>} : memref<64x24xbf16, #tpu.memory_space<vmem>>, vector<16x24xbf16>,
    %c0_24 = arith.constant 0 : index
    %c0_25 = arith.constant 0 : index
    %62 = vector.load %arg6[%c0_24, %c0_25] : memref<64x24xbf16, #tpu.memory_space<vmem>>, vector<64x8xbf16>
    %c0_26 = arith.constant 0 : index
    %c8 = arith.constant 8 : index
    %63 = vector.load %arg6[%c0_26, %c8] : memref<64x24xbf16, #tpu.memory_space<vmem>>, vector<64x8xbf16>
    %c0_27 = arith.constant 0 : index
    %c16_28 = arith.constant 16 : index
    %64 = vector.load %arg6[%c0_27, %c16_28] : memref<64x24xbf16, #tpu.memory_space<vmem>>, vector<64x8xbf16>
    %cst_29 = arith.constant dense<0.000000e+00> : vector<64x64xf32>
    %65 = tpu.matmul %62, %63, %cst_29 {dimension_numbers = #tpu.dot_dimension_numbers<[1], [1], [0], [0], [0, 0, 1, 0], [], []>} : vector<64x8xbf16>, vector<64x8xbf16>, vector<64x64xf32> -> vector<64x64xf32>
    %c0_30 = arith.constant 0 : index
    %c0_31 = arith.constant 0 : index
    %66 = vector.load %arg2[%c0_30, %c0_31] : memref<64x64xf32, #tpu.memory_space<vmem>>, vector<64x64xf32>
    %67 = arith.addf %65, %66 : vector<64x64xf32>
    %cst_32 = arith.constant dense<0xFF800000> : vector<64xf32>
    %68 = vector.multi_reduction <maximumf>, %67, %cst_32 [1] : vector<64x64xf32> to vector<64xf32>
    %69 = vector.shape_cast %68 : vector<64xf32> to vector<64x1xf32>
    %70 = vector.broadcast %69 : vector<64x1xf32> to vector<64x64xf32>
    %71 = arith.subf %67, %70 : vector<64x64xf32>
    %72 = math.exp %71 : vector<64x64xf32>
    %cst_33 = arith.constant dense<0.000000e+00> : vector<64xf32>
    %73 = vector.multi_reduction <add>, %72, %cst_33 [1] : vector<64x64xf32> to vector<64xf32>
    %74 = vector.shape_cast %73 : vector<64xf32> to vector<64x1xf32>
    %75 = tpu.reciprocal %74 {approx = true} : vector<64x1xf32> -> vector<64x1xf32>
    %76 = vector.broadcast %75 : vector<64x1xf32> to vector<64x64xf32>
    %77 = arith.mulf %72, %76 : vector<64x64xf32>
    %78 = arith.truncf %77 : vector<64x64xf32> to vector<64x64xbf16>
    %cst_34 = arith.constant dense<0.000000e+00> : vector<64x8xf32>
    %79 = tpu.matmul %78, %64, %cst_34 {dimension_numbers = #tpu.dot_dimension_numbers<[1], [0], [0], [1], [0, 0, 1, 1], [], []>} : vector<64x64xbf16>, vector<64x8xbf16>, vector<64x8xf32> -> vector<64x8xf32>
    %80 = vector.extract_strided_slice %79 {offsets = [0, 0], sizes = [16, 8], strides = [1, 1]} : vector<64x8xf32> to vector<16x8xf32>
    %c0_35 = arith.constant 0 : index
    %c0_36 = arith.constant 0 : index
    %81 = vector.load %arg7[%c0_35, %c0_36] : memref<16x32xf32, #tpu.memory_space<vmem>>, vector<16x8xf32>
    tpu.vector_store %arg7[%c0_35, %c0_36], %80 {strides = array<i32>} : memref<16x32xf32, #tpu.memory_space<vmem>>, vector<16x8xf32>,
    %82 = vector.extract_strided_slice %79 {offsets = [16, 0], sizes = [16, 8], strides = [1, 1]} : vector<64x8xf32> to vector<16x8xf32>
    %c0_37 = arith.constant 0 : index
    %c8_38 = arith.constant 8 : index
    %83 = vector.load %arg7[%c0_37, %c8_38] : memref<16x32xf32, #tpu.memory_space<vmem>>, vector<16x8xf32>
    tpu.vector_store %arg7[%c0_37, %c8_38], %82 {strides = array<i32>} : memref<16x32xf32, #tpu.memory_space<vmem>>, vector<16x8xf32>,
    %84 = vector.extract_strided_slice %79 {offsets = [32, 0], sizes = [16, 8], strides = [1, 1]} : vector<64x8xf32> to vector<16x8xf32>
    %c0_39 = arith.constant 0 : index
    %c16_40 = arith.constant 16 : index
    %85 = vector.load %arg7[%c0_39, %c16_40] : memref<16x32xf32, #tpu.memory_space<vmem>>, vector<16x8xf32>
    tpu.vector_store %arg7[%c0_39, %c16_40], %84 {strides = array<i32>} : memref<16x32xf32, #tpu.memory_space<vmem>>, vector<16x8xf32>,
    %86 = vector.extract_strided_slice %79 {offsets = [48, 0], sizes = [16, 8], strides = [1, 1]} : vector<64x8xf32> to vector<16x8xf32>
    %c0_41 = arith.constant 0 : index
    %c24 = arith.constant 24 : index
    %87 = vector.load %arg7[%c0_41, %c24] : memref<16x32xf32, #tpu.memory_space<vmem>>, vector<16x8xf32>
    tpu.vector_store %arg7[%c0_41, %c24], %86 {strides = array<i32>} : memref<16x32xf32, #tpu.memory_space<vmem>>, vector<16x8xf32>,
    %c64 = arith.constant 64 : index
    %c0_42 = arith.constant 0 : index
    %88 = vector.load %arg4[%c64, %c0_42] : memref<352x96xbf16, #tpu.memory_space<vmem>>, vector<32x32xbf16>
    %c0_43 = arith.constant 0 : index
    %c0_44 = arith.constant 0 : index
    %89 = vector.load %arg7[%c0_43, %c0_44] : memref<16x32xf32, #tpu.memory_space<vmem>>, vector<16x32xf32>
    %90 = arith.truncf %89 : vector<16x32xf32> to vector<16x32xbf16>
    %cst_45 = arith.constant dense<0.000000e+00> : vector<16x32xf32>
    %91 = tpu.matmul %90, %88, %cst_45 {dimension_numbers = #tpu.dot_dimension_numbers<[1], [0], [0], [1], [0, 0, 1, 1], [], []>} : vector<16x32xbf16>, vector<32x32xbf16>, vector<16x32xf32> -> vector<16x32xf32>
    %c3 = arith.constant 3 : index
    %c0_46 = arith.constant 0 : index
    %92 = vector.load %arg3[%c3, %c0_46] : memref<24x128xf32, #tpu.memory_space<vmem>>, vector<1x32xf32>
    %93 = vector.broadcast %92 : vector<1x32xf32> to vector<16x32xf32>
    %94 = arith.addf %91, %93 : vector<16x32xf32>
    %95 = arith.addf %43, %94 : vector<16x32xf32>
    %c4 = arith.constant 4 : index
    %c0_47 = arith.constant 0 : index
    %96 = vector.load %arg3[%c4, %c0_47] : memref<24x128xf32, #tpu.memory_space<vmem>>, vector<1x32xf32>
    %c5 = arith.constant 5 : index
    %c0_48 = arith.constant 0 : index
    %97 = vector.load %arg3[%c5, %c0_48] : memref<24x128xf32, #tpu.memory_space<vmem>>, vector<1x32xf32>
    %cst_49 = arith.constant dense<0.000000e+00> : vector<16xf32>
    %98 = vector.multi_reduction <add>, %95, %cst_49 [1] : vector<16x32xf32> to vector<16xf32>
    %99 = vector.shape_cast %98 : vector<16xf32> to vector<16x1xf32>
    %cst_50 = arith.constant 3.200000e+01 : f32
    %100 = vector.broadcast %cst_50 : f32 to vector<16x1xf32>
    %101 = arith.divf %99, %100 : vector<16x1xf32>
    %102 = vector.broadcast %101 : vector<16x1xf32> to vector<16x32xf32>
    %103 = arith.subf %95, %102 : vector<16x32xf32>
    %104 = arith.mulf %103, %103 : vector<16x32xf32>
    %cst_51 = arith.constant dense<0.000000e+00> : vector<16xf32>
    %105 = vector.multi_reduction <add>, %104, %cst_51 [1] : vector<16x32xf32> to vector<16xf32>
    %106 = vector.shape_cast %105 : vector<16xf32> to vector<16x1xf32>
    %cst_52 = arith.constant 3.200000e+01 : f32
    %107 = vector.broadcast %cst_52 : f32 to vector<16x1xf32>
    %108 = arith.divf %106, %107 : vector<16x1xf32>
    %109 = vector.broadcast %101 : vector<16x1xf32> to vector<16x32xf32>
    %110 = arith.subf %95, %109 : vector<16x32xf32>
    %cst_53 = arith.constant 9.99999996E-13 : f32
    %111 = vector.broadcast %cst_53 : f32 to vector<16x1xf32>
    %112 = arith.addf %108, %111 : vector<16x1xf32>
    %113 = math.rsqrt %112 : vector<16x1xf32>
    %114 = vector.broadcast %113 : vector<16x1xf32> to vector<16x32xf32>
    %115 = arith.mulf %110, %114 : vector<16x32xf32>
    %116 = vector.broadcast %96 : vector<1x32xf32> to vector<16x32xf32>
    %117 = arith.mulf %115, %116 : vector<16x32xf32>
    %118 = vector.broadcast %97 : vector<1x32xf32> to vector<16x32xf32>
    %119 = arith.addf %117, %118 : vector<16x32xf32>
    %c128 = arith.constant 128 : index
    %c0_54 = arith.constant 0 : index
    %120 = vector.load %arg4[%c128, %c0_54] : memref<352x96xbf16, #tpu.memory_space<vmem>>, vector<32x64xbf16>
    %121 = arith.truncf %119 : vector<16x32xf32> to vector<16x32xbf16>
    %cst_55 = arith.constant dense<0.000000e+00> : vector<16x64xf32>
    %122 = tpu.matmul %121, %120, %cst_55 {dimension_numbers = #tpu.dot_dimension_numbers<[1], [0], [0], [1], [0, 0, 1, 1], [], []>} : vector<16x32xbf16>, vector<32x64xbf16>, vector<16x64xf32> -> vector<16x64xf32>
    %c6 = arith.constant 6 : index
    %c0_56 = arith.constant 0 : index
    %123 = vector.load %arg3[%c6, %c0_56] : memref<24x128xf32, #tpu.memory_space<vmem>>, vector<1x64xf32>
    %124 = vector.broadcast %123 : vector<1x64xf32> to vector<16x64xf32>
    %125 = arith.addf %122, %124 : vector<16x64xf32>
    %cst_57 = arith.constant 5.000000e-01 : f32
    %126 = vector.broadcast %cst_57 : f32 to vector<16x64xf32>
    %127 = arith.mulf %126, %125 : vector<16x64xf32>
    %cst_58 = arith.constant 0.707106769 : f32
    %128 = vector.broadcast %cst_58 : f32 to vector<16x64xf32>
    %129 = arith.mulf %125, %128 : vector<16x64xf32>
    %cst_59 = arith.constant 0.000000e+00 : f32
    %130 = vector.broadcast %cst_59 : f32 to vector<16x64xf32>
    %131 = arith.cmpf olt, %129, %130 : vector<16x64xf32>
    %cst_60 = arith.constant -1.000000e+00 : f32
    %cst_61 = arith.constant 1.000000e+00 : f32
    %132 = vector.broadcast %cst_60 : f32 to vector<16x64xf32>
    %133 = vector.broadcast %cst_61 : f32 to vector<16x64xf32>
    %134 = arith.select %131, %132, %133 : vector<16x64xi1>, vector<16x64xf32>
    %135 = math.absf %129 : vector<16x64xf32>
    %cst_62 = arith.constant 0.327591091 : f32
    %136 = vector.broadcast %cst_62 : f32 to vector<16x64xf32>
    %137 = arith.mulf %136, %135 : vector<16x64xf32>
    %cst_63 = arith.constant 1.000000e+00 : f32
    %138 = vector.broadcast %cst_63 : f32 to vector<16x64xf32>
    %139 = arith.addf %138, %137 : vector<16x64xf32>
    %140 = tpu.reciprocal %139 : vector<16x64xf32> -> vector<16x64xf32>
    %cst_64 = arith.constant 1.06140542 : f32
    %141 = vector.broadcast %cst_64 : f32 to vector<16x64xf32>
    %142 = arith.mulf %141, %140 : vector<16x64xf32>
    %cst_65 = arith.constant -1.45315206 : f32
    %143 = vector.broadcast %cst_65 : f32 to vector<16x64xf32>
    %144 = arith.addf %142, %143 : vector<16x64xf32>
    %145 = arith.mulf %144, %140 : vector<16x64xf32>
    %cst_66 = arith.constant 1.42141378 : f32
    %146 = vector.broadcast %cst_66 : f32 to vector<16x64xf32>
    %147 = arith.addf %145, %146 : vector<16x64xf32>
    %148 = arith.mulf %147, %140 : vector<16x64xf32>
    %cst_67 = arith.constant -0.284496725 : f32
    %149 = vector.broadcast %cst_67 : f32 to vector<16x64xf32>
    %150 = arith.addf %148, %149 : vector<16x64xf32>
    %151 = arith.mulf %150, %140 : vector<16x64xf32>
    %cst_68 = arith.constant 0.254829586 : f32
    %152 = vector.broadcast %cst_68 : f32 to vector<16x64xf32>
    %153 = arith.addf %151, %152 : vector<16x64xf32>
    %154 = arith.mulf %153, %140 : vector<16x64xf32>
    %cst_69 = arith.constant 0.000000e+00 : f32
    %155 = vector.broadcast %cst_69 : f32 to vector<16x64xf32>
    %156 = arith.subf %155, %135 : vector<16x64xf32>
    %157 = arith.mulf %156, %135 : vector<16x64xf32>
    %158 = math.exp %157 : vector<16x64xf32>
    %159 = arith.mulf %154, %158 : vector<16x64xf32>
    %cst_70 = arith.constant 1.000000e+00 : f32
    %160 = vector.broadcast %cst_70 : f32 to vector<16x64xf32>
    %161 = arith.subf %160, %159 : vector<16x64xf32>
    %162 = arith.mulf %134, %161 : vector<16x64xf32>
    %cst_71 = arith.constant 1.000000e+00 : f32
    %163 = vector.broadcast %cst_71 : f32 to vector<16x64xf32>
    %164 = arith.addf %163, %162 : vector<16x64xf32>
    %165 = arith.mulf %127, %164 : vector<16x64xf32>
    %c192 = arith.constant 192 : index
    %c0_72 = arith.constant 0 : index
    %166 = vector.load %arg4[%c192, %c0_72] : memref<352x96xbf16, #tpu.memory_space<vmem>>, vector<64x32xbf16>
    %167 = arith.truncf %165 : vector<16x64xf32> to vector<16x64xbf16>
    %cst_73 = arith.constant dense<0.000000e+00> : vector<16x32xf32>
    %168 = tpu.matmul %167, %166, %cst_73 {dimension_numbers = #tpu.dot_dimension_numbers<[1], [0], [0], [1], [0, 0, 1, 1], [], []>} : vector<16x64xbf16>, vector<64x32xbf16>, vector<16x32xf32> -> vector<16x32xf32>
    %c7 = arith.constant 7 : index
    %c0_74 = arith.constant 0 : index
    %169 = vector.load %arg3[%c7, %c0_74] : memref<24x128xf32, #tpu.memory_space<vmem>>, vector<1x32xf32>
    %170 = vector.broadcast %169 : vector<1x32xf32> to vector<16x32xf32>
    %171 = arith.addf %168, %170 : vector<16x32xf32>
    %172 = arith.addf %119, %171 : vector<16x32xf32>
    %c8_75 = arith.constant 8 : index
    %c0_76 = arith.constant 0 : index
    %173 = vector.load %arg3[%c8_75, %c0_76] : memref<24x128xf32, #tpu.memory_space<vmem>>, vector<1x32xf32>
    %c9 = arith.constant 9 : index
    %c0_77 = arith.constant 0 : index
    %174 = vector.load %arg3[%c9, %c0_77] : memref<24x128xf32, #tpu.memory_space<vmem>>, vector<1x32xf32>
    %cst_78 = arith.constant dense<0.000000e+00> : vector<16xf32>
    %175 = vector.multi_reduction <add>, %172, %cst_78 [1] : vector<16x32xf32> to vector<16xf32>
    %176 = vector.shape_cast %175 : vector<16xf32> to vector<16x1xf32>
    %cst_79 = arith.constant 3.200000e+01 : f32
    %177 = vector.broadcast %cst_79 : f32 to vector<16x1xf32>
    %178 = arith.divf %176, %177 : vector<16x1xf32>
    %179 = vector.broadcast %178 : vector<16x1xf32> to vector<16x32xf32>
    %180 = arith.subf %172, %179 : vector<16x32xf32>
    %181 = arith.mulf %180, %180 : vector<16x32xf32>
    %cst_80 = arith.constant dense<0.000000e+00> : vector<16xf32>
    %182 = vector.multi_reduction <add>, %181, %cst_80 [1] : vector<16x32xf32> to vector<16xf32>
    %183 = vector.shape_cast %182 : vector<16xf32> to vector<16x1xf32>
    %cst_81 = arith.constant 3.200000e+01 : f32
    %184 = vector.broadcast %cst_81 : f32 to vector<16x1xf32>
    %185 = arith.divf %183, %184 : vector<16x1xf32>
    %186 = vector.broadcast %178 : vector<16x1xf32> to vector<16x32xf32>
    %187 = arith.subf %172, %186 : vector<16x32xf32>
    %cst_82 = arith.constant 9.99999996E-13 : f32
    %188 = vector.broadcast %cst_82 : f32 to vector<16x1xf32>
    %189 = arith.addf %185, %188 : vector<16x1xf32>
    %190 = math.rsqrt %189 : vector<16x1xf32>
    %191 = vector.broadcast %190 : vector<16x1xf32> to vector<16x32xf32>
    %192 = arith.mulf %187, %191 : vector<16x32xf32>
    %193 = vector.broadcast %173 : vector<1x32xf32> to vector<16x32xf32>
    %194 = arith.mulf %192, %193 : vector<16x32xf32>
    %195 = vector.broadcast %174 : vector<1x32xf32> to vector<16x32xf32>
    %196 = arith.addf %194, %195 : vector<16x32xf32>
    %c32_83 = arith.constant 32 : index
    %c0_84 = arith.constant 0 : index
    %197 = vector.load %arg4[%c32_83, %c0_84] : memref<352x96xbf16, #tpu.memory_space<vmem>>, vector<32x96xbf16>
    %198 = arith.truncf %196 : vector<16x32xf32> to vector<16x32xbf16>
    %cst_85 = arith.constant dense<0.000000e+00> : vector<16x96xf32>
    %199 = tpu.matmul %198, %197, %cst_85 {dimension_numbers = #tpu.dot_dimension_numbers<[1], [0], [0], [1], [0, 0, 1, 1], [], []>} : vector<16x32xbf16>, vector<32x96xbf16>, vector<16x96xf32> -> vector<16x96xf32>
    %c10 = arith.constant 10 : index
    %c0_86 = arith.constant 0 : index
    %200 = vector.load %arg3[%c10, %c0_86] : memref<24x128xf32, #tpu.memory_space<vmem>>, vector<1x96xf32>
    %201 = vector.broadcast %200 : vector<1x96xf32> to vector<16x96xf32>
    %202 = arith.addf %199, %201 : vector<16x96xf32>
    %203 = vector.extract_strided_slice %202 {offsets = [0, 0], sizes = [16, 24], strides = [1, 1]} : vector<16x96xf32> to vector<16x24xf32>
    %204 = arith.truncf %203 : vector<16x24xf32> to vector<16x24xbf16>
    %c0_87 = arith.constant 0 : index
    %c0_88 = arith.constant 0 : index
    %205 = vector.load %arg6[%c0_87, %c0_88] : memref<64x24xbf16, #tpu.memory_space<vmem>>, vector<16x24xbf16>
    tpu.vector_store %arg6[%c0_87, %c0_88], %204 {strides = array<i32>} : memref<64x24xbf16, #tpu.memory_space<vmem>>, vector<16x24xbf16>,
    %206 = vector.extract_strided_slice %202 {offsets = [0, 24], sizes = [16, 24], strides = [1, 1]} : vector<16x96xf32> to vector<16x24xf32>
    %207 = arith.truncf %206 : vector<16x24xf32> to vector<16x24xbf16>
    %c16_89 = arith.constant 16 : index
    %c0_90 = arith.constant 0 : index
    %208 = vector.load %arg6[%c16_89, %c0_90] : memref<64x24xbf16, #tpu.memory_space<vmem>>, vector<16x24xbf16>
    tpu.vector_store %arg6[%c16_89, %c0_90], %207 {strides = array<i32>} : memref<64x24xbf16, #tpu.memory_space<vmem>>, vector<16x24xbf16>,
    %209 = vector.extract_strided_slice %202 {offsets = [0, 48], sizes = [16, 24], strides = [1, 1]} : vector<16x96xf32> to vector<16x24xf32>
    %210 = arith.truncf %209 : vector<16x24xf32> to vector<16x24xbf16>
    %c32_91 = arith.constant 32 : index
    %c0_92 = arith.constant 0 : index
    %211 = vector.load %arg6[%c32_91, %c0_92] : memref<64x24xbf16, #tpu.memory_space<vmem>>, vector<16x24xbf16>
    tpu.vector_store %arg6[%c32_91, %c0_92], %210 {strides = array<i32>} : memref<64x24xbf16, #tpu.memory_space<vmem>>, vector<16x24xbf16>,
    %212 = vector.extract_strided_slice %202 {offsets = [0, 72], sizes = [16, 24], strides = [1, 1]} : vector<16x96xf32> to vector<16x24xf32>
    %213 = arith.truncf %212 : vector<16x24xf32> to vector<16x24xbf16>
    %c48_93 = arith.constant 48 : index
    %c0_94 = arith.constant 0 : index
    %214 = vector.load %arg6[%c48_93, %c0_94] : memref<64x24xbf16, #tpu.memory_space<vmem>>, vector<16x24xbf16>
    tpu.vector_store %arg6[%c48_93, %c0_94], %213 {strides = array<i32>} : memref<64x24xbf16, #tpu.memory_space<vmem>>, vector<16x24xbf16>,
    %c0_95 = arith.constant 0 : index
    %c0_96 = arith.constant 0 : index
    %215 = vector.load %arg6[%c0_95, %c0_96] : memref<64x24xbf16, #tpu.memory_space<vmem>>, vector<64x8xbf16>
    %c0_97 = arith.constant 0 : index
    %c8_98 = arith.constant 8 : index
    %216 = vector.load %arg6[%c0_97, %c8_98] : memref<64x24xbf16, #tpu.memory_space<vmem>>, vector<64x8xbf16>
    %c0_99 = arith.constant 0 : index
    %c16_100 = arith.constant 16 : index
    %217 = vector.load %arg6[%c0_99, %c16_100] : memref<64x24xbf16, #tpu.memory_space<vmem>>, vector<64x8xbf16>
    %cst_101 = arith.constant dense<0.000000e+00> : vector<64x64xf32>
    %218 = tpu.matmul %215, %216, %cst_101 {dimension_numbers = #tpu.dot_dimension_numbers<[1], [1], [0], [0], [0, 0, 1, 0], [], []>} : vector<64x8xbf16>, vector<64x8xbf16>, vector<64x64xf32> -> vector<64x64xf32>
    %c0_102 = arith.constant 0 : index
    %c0_103 = arith.constant 0 : index
    %219 = vector.load %arg2[%c0_102, %c0_103] : memref<64x64xf32, #tpu.memory_space<vmem>>, vector<64x64xf32>
    %220 = arith.addf %218, %219 : vector<64x64xf32>
    %cst_104 = arith.constant dense<0xFF800000> : vector<64xf32>
    %221 = vector.multi_reduction <maximumf>, %220, %cst_104 [1] : vector<64x64xf32> to vector<64xf32>
    %222 = vector.shape_cast %221 : vector<64xf32> to vector<64x1xf32>
    %223 = vector.broadcast %222 : vector<64x1xf32> to vector<64x64xf32>
    %224 = arith.subf %220, %223 : vector<64x64xf32>
    %225 = math.exp %224 : vector<64x64xf32>
    %cst_105 = arith.constant dense<0.000000e+00> : vector<64xf32>
    %226 = vector.multi_reduction <add>, %225, %cst_105 [1] : vector<64x64xf32> to vector<64xf32>
    %227 = vector.shape_cast %226 : vector<64xf32> to vector<64x1xf32>
    %228 = tpu.reciprocal %227 {approx = true} : vector<64x1xf32> -> vector<64x1xf32>
    %229 = vector.broadcast %228 : vector<64x1xf32> to vector<64x64xf32>
    %230 = arith.mulf %225, %229 : vector<64x64xf32>
    %231 = arith.truncf %230 : vector<64x64xf32> to vector<64x64xbf16>
    %cst_106 = arith.constant dense<0.000000e+00> : vector<64x8xf32>
    %232 = tpu.matmul %231, %217, %cst_106 {dimension_numbers = #tpu.dot_dimension_numbers<[1], [0], [0], [1], [0, 0, 1, 1], [], []>} : vector<64x64xbf16>, vector<64x8xbf16>, vector<64x8xf32> -> vector<64x8xf32>
    %233 = vector.extract_strided_slice %232 {offsets = [0, 0], sizes = [16, 8], strides = [1, 1]} : vector<64x8xf32> to vector<16x8xf32>
    %c0_107 = arith.constant 0 : index
    %c0_108 = arith.constant 0 : index
    %234 = vector.load %arg7[%c0_107, %c0_108] : memref<16x32xf32, #tpu.memory_space<vmem>>, vector<16x8xf32>
    tpu.vector_store %arg7[%c0_107, %c0_108], %233 {strides = array<i32>} : memref<16x32xf32, #tpu.memory_space<vmem>>, vector<16x8xf32>,
    %235 = vector.extract_strided_slice %232 {offsets = [16, 0], sizes = [16, 8], strides = [1, 1]} : vector<64x8xf32> to vector<16x8xf32>
    %c0_109 = arith.constant 0 : index
    %c8_110 = arith.constant 8 : index
    %236 = vector.load %arg7[%c0_109, %c8_110] : memref<16x32xf32, #tpu.memory_space<vmem>>, vector<16x8xf32>
    tpu.vector_store %arg7[%c0_109, %c8_110], %235 {strides = array<i32>} : memref<16x32xf32, #tpu.memory_space<vmem>>, vector<16x8xf32>,
    %237 = vector.extract_strided_slice %232 {offsets = [32, 0], sizes = [16, 8], strides = [1, 1]} : vector<64x8xf32> to vector<16x8xf32>
    %c0_111 = arith.constant 0 : index
    %c16_112 = arith.constant 16 : index
    %238 = vector.load %arg7[%c0_111, %c16_112] : memref<16x32xf32, #tpu.memory_space<vmem>>, vector<16x8xf32>
    tpu.vector_store %arg7[%c0_111, %c16_112], %237 {strides = array<i32>} : memref<16x32xf32, #tpu.memory_space<vmem>>, vector<16x8xf32>,
    %239 = vector.extract_strided_slice %232 {offsets = [48, 0], sizes = [16, 8], strides = [1, 1]} : vector<64x8xf32> to vector<16x8xf32>
    %c0_113 = arith.constant 0 : index
    %c24_114 = arith.constant 24 : index
    %240 = vector.load %arg7[%c0_113, %c24_114] : memref<16x32xf32, #tpu.memory_space<vmem>>, vector<16x8xf32>
    tpu.vector_store %arg7[%c0_113, %c24_114], %239 {strides = array<i32>} : memref<16x32xf32, #tpu.memory_space<vmem>>, vector<16x8xf32>,
    %c96 = arith.constant 96 : index
    %c0_115 = arith.constant 0 : index
    %241 = vector.load %arg4[%c96, %c0_115] : memref<352x96xbf16, #tpu.memory_space<vmem>>, vector<32x32xbf16>
    %c0_116 = arith.constant 0 : index
    %c0_117 = arith.constant 0 : index
    %242 = vector.load %arg7[%c0_116, %c0_117] : memref<16x32xf32, #tpu.memory_space<vmem>>, vector<16x32xf32>
    %243 = arith.truncf %242 : vector<16x32xf32> to vector<16x32xbf16>
    %cst_118 = arith.constant dense<0.000000e+00> : vector<16x32xf32>
    %244 = tpu.matmul %243, %241, %cst_118 {dimension_numbers = #tpu.dot_dimension_numbers<[1], [0], [0], [1], [0, 0, 1, 1], [], []>} : vector<16x32xbf16>, vector<32x32xbf16>, vector<16x32xf32> -> vector<16x32xf32>
    %c11 = arith.constant 11 : index
    %c0_119 = arith.constant 0 : index
    %245 = vector.load %arg3[%c11, %c0_119] : memref<24x128xf32, #tpu.memory_space<vmem>>, vector<1x32xf32>
    %246 = vector.broadcast %245 : vector<1x32xf32> to vector<16x32xf32>
    %247 = arith.addf %244, %246 : vector<16x32xf32>
    %248 = arith.addf %196, %247 : vector<16x32xf32>
    %c12 = arith.constant 12 : index
    %c0_120 = arith.constant 0 : index
    %249 = vector.load %arg3[%c12, %c0_120] : memref<24x128xf32, #tpu.memory_space<vmem>>, vector<1x32xf32>
    %c13 = arith.constant 13 : index
    %c0_121 = arith.constant 0 : index
    %250 = vector.load %arg3[%c13, %c0_121] : memref<24x128xf32, #tpu.memory_space<vmem>>, vector<1x32xf32>
    %cst_122 = arith.constant dense<0.000000e+00> : vector<16xf32>
    %251 = vector.multi_reduction <add>, %248, %cst_122 [1] : vector<16x32xf32> to vector<16xf32>
    %252 = vector.shape_cast %251 : vector<16xf32> to vector<16x1xf32>
    %cst_123 = arith.constant 3.200000e+01 : f32
    %253 = vector.broadcast %cst_123 : f32 to vector<16x1xf32>
    %254 = arith.divf %252, %253 : vector<16x1xf32>
    %255 = vector.broadcast %254 : vector<16x1xf32> to vector<16x32xf32>
    %256 = arith.subf %248, %255 : vector<16x32xf32>
    %257 = arith.mulf %256, %256 : vector<16x32xf32>
    %cst_124 = arith.constant dense<0.000000e+00> : vector<16xf32>
    %258 = vector.multi_reduction <add>, %257, %cst_124 [1] : vector<16x32xf32> to vector<16xf32>
    %259 = vector.shape_cast %258 : vector<16xf32> to vector<16x1xf32>
    %cst_125 = arith.constant 3.200000e+01 : f32
    %260 = vector.broadcast %cst_125 : f32 to vector<16x1xf32>
    %261 = arith.divf %259, %260 : vector<16x1xf32>
    %262 = vector.broadcast %254 : vector<16x1xf32> to vector<16x32xf32>
    %263 = arith.subf %248, %262 : vector<16x32xf32>
    %cst_126 = arith.constant 9.99999996E-13 : f32
    %264 = vector.broadcast %cst_126 : f32 to vector<16x1xf32>
    %265 = arith.addf %261, %264 : vector<16x1xf32>
    %266 = math.rsqrt %265 : vector<16x1xf32>
    %267 = vector.broadcast %266 : vector<16x1xf32> to vector<16x32xf32>
    %268 = arith.mulf %263, %267 : vector<16x32xf32>
    %269 = vector.broadcast %249 : vector<1x32xf32> to vector<16x32xf32>
    %270 = arith.mulf %268, %269 : vector<16x32xf32>
    %271 = vector.broadcast %250 : vector<1x32xf32> to vector<16x32xf32>
    %272 = arith.addf %270, %271 : vector<16x32xf32>
    %c160 = arith.constant 160 : index
    %c0_127 = arith.constant 0 : index
    %273 = vector.load %arg4[%c160, %c0_127] : memref<352x96xbf16, #tpu.memory_space<vmem>>, vector<32x64xbf16>
    %274 = arith.truncf %272 : vector<16x32xf32> to vector<16x32xbf16>
    %cst_128 = arith.constant dense<0.000000e+00> : vector<16x64xf32>
    %275 = tpu.matmul %274, %273, %cst_128 {dimension_numbers = #tpu.dot_dimension_numbers<[1], [0], [0], [1], [0, 0, 1, 1], [], []>} : vector<16x32xbf16>, vector<32x64xbf16>, vector<16x64xf32> -> vector<16x64xf32>
    %c14 = arith.constant 14 : index
    %c0_129 = arith.constant 0 : index
    %276 = vector.load %arg3[%c14, %c0_129] : memref<24x128xf32, #tpu.memory_space<vmem>>, vector<1x64xf32>
    %277 = vector.broadcast %276 : vector<1x64xf32> to vector<16x64xf32>
    %278 = arith.addf %275, %277 : vector<16x64xf32>
    %cst_130 = arith.constant 5.000000e-01 : f32
    %279 = vector.broadcast %cst_130 : f32 to vector<16x64xf32>
    %280 = arith.mulf %279, %278 : vector<16x64xf32>
    %cst_131 = arith.constant 0.707106769 : f32
    %281 = vector.broadcast %cst_131 : f32 to vector<16x64xf32>
    %282 = arith.mulf %278, %281 : vector<16x64xf32>
    %cst_132 = arith.constant 0.000000e+00 : f32
    %283 = vector.broadcast %cst_132 : f32 to vector<16x64xf32>
    %284 = arith.cmpf olt, %282, %283 : vector<16x64xf32>
    %cst_133 = arith.constant -1.000000e+00 : f32
    %cst_134 = arith.constant 1.000000e+00 : f32
    %285 = vector.broadcast %cst_133 : f32 to vector<16x64xf32>
    %286 = vector.broadcast %cst_134 : f32 to vector<16x64xf32>
    %287 = arith.select %284, %285, %286 : vector<16x64xi1>, vector<16x64xf32>
    %288 = math.absf %282 : vector<16x64xf32>
    %cst_135 = arith.constant 0.327591091 : f32
    %289 = vector.broadcast %cst_135 : f32 to vector<16x64xf32>
    %290 = arith.mulf %289, %288 : vector<16x64xf32>
    %cst_136 = arith.constant 1.000000e+00 : f32
    %291 = vector.broadcast %cst_136 : f32 to vector<16x64xf32>
    %292 = arith.addf %291, %290 : vector<16x64xf32>
    %293 = tpu.reciprocal %292 : vector<16x64xf32> -> vector<16x64xf32>
    %cst_137 = arith.constant 1.06140542 : f32
    %294 = vector.broadcast %cst_137 : f32 to vector<16x64xf32>
    %295 = arith.mulf %294, %293 : vector<16x64xf32>
    %cst_138 = arith.constant -1.45315206 : f32
    %296 = vector.broadcast %cst_138 : f32 to vector<16x64xf32>
    %297 = arith.addf %295, %296 : vector<16x64xf32>
    %298 = arith.mulf %297, %293 : vector<16x64xf32>
    %cst_139 = arith.constant 1.42141378 : f32
    %299 = vector.broadcast %cst_139 : f32 to vector<16x64xf32>
    %300 = arith.addf %298, %299 : vector<16x64xf32>
    %301 = arith.mulf %300, %293 : vector<16x64xf32>
    %cst_140 = arith.constant -0.284496725 : f32
    %302 = vector.broadcast %cst_140 : f32 to vector<16x64xf32>
    %303 = arith.addf %301, %302 : vector<16x64xf32>
    %304 = arith.mulf %303, %293 : vector<16x64xf32>
    %cst_141 = arith.constant 0.254829586 : f32
    %305 = vector.broadcast %cst_141 : f32 to vector<16x64xf32>
    %306 = arith.addf %304, %305 : vector<16x64xf32>
    %307 = arith.mulf %306, %293 : vector<16x64xf32>
    %cst_142 = arith.constant 0.000000e+00 : f32
    %308 = vector.broadcast %cst_142 : f32 to vector<16x64xf32>
    %309 = arith.subf %308, %288 : vector<16x64xf32>
    %310 = arith.mulf %309, %288 : vector<16x64xf32>
    %311 = math.exp %310 : vector<16x64xf32>
    %312 = arith.mulf %307, %311 : vector<16x64xf32>
    %cst_143 = arith.constant 1.000000e+00 : f32
    %313 = vector.broadcast %cst_143 : f32 to vector<16x64xf32>
    %314 = arith.subf %313, %312 : vector<16x64xf32>
    %315 = arith.mulf %287, %314 : vector<16x64xf32>
    %cst_144 = arith.constant 1.000000e+00 : f32
    %316 = vector.broadcast %cst_144 : f32 to vector<16x64xf32>
    %317 = arith.addf %316, %315 : vector<16x64xf32>
    %318 = arith.mulf %280, %317 : vector<16x64xf32>
    %c256 = arith.constant 256 : index
    %c0_145 = arith.constant 0 : index
    %319 = vector.load %arg4[%c256, %c0_145] : memref<352x96xbf16, #tpu.memory_space<vmem>>, vector<64x32xbf16>
    %320 = arith.truncf %318 : vector<16x64xf32> to vector<16x64xbf16>
    %cst_146 = arith.constant dense<0.000000e+00> : vector<16x32xf32>
    %321 = tpu.matmul %320, %319, %cst_146 {dimension_numbers = #tpu.dot_dimension_numbers<[1], [0], [0], [1], [0, 0, 1, 1], [], []>} : vector<16x64xbf16>, vector<64x32xbf16>, vector<16x32xf32> -> vector<16x32xf32>
    %c15 = arith.constant 15 : index
    %c0_147 = arith.constant 0 : index
    %322 = vector.load %arg3[%c15, %c0_147] : memref<24x128xf32, #tpu.memory_space<vmem>>, vector<1x32xf32>
    %323 = vector.broadcast %322 : vector<1x32xf32> to vector<16x32xf32>
    %324 = arith.addf %321, %323 : vector<16x32xf32>
    %325 = arith.addf %272, %324 : vector<16x32xf32>
    %c16_148 = arith.constant 16 : index
    %c0_149 = arith.constant 0 : index
    %326 = vector.load %arg3[%c16_148, %c0_149] : memref<24x128xf32, #tpu.memory_space<vmem>>, vector<1x32xf32>
    %c17 = arith.constant 17 : index
    %c0_150 = arith.constant 0 : index
    %327 = vector.load %arg3[%c17, %c0_150] : memref<24x128xf32, #tpu.memory_space<vmem>>, vector<1x32xf32>
    %cst_151 = arith.constant dense<0.000000e+00> : vector<16xf32>
    %328 = vector.multi_reduction <add>, %325, %cst_151 [1] : vector<16x32xf32> to vector<16xf32>
    %329 = vector.shape_cast %328 : vector<16xf32> to vector<16x1xf32>
    %cst_152 = arith.constant 3.200000e+01 : f32
    %330 = vector.broadcast %cst_152 : f32 to vector<16x1xf32>
    %331 = arith.divf %329, %330 : vector<16x1xf32>
    %332 = vector.broadcast %331 : vector<16x1xf32> to vector<16x32xf32>
    %333 = arith.subf %325, %332 : vector<16x32xf32>
    %334 = arith.mulf %333, %333 : vector<16x32xf32>
    %cst_153 = arith.constant dense<0.000000e+00> : vector<16xf32>
    %335 = vector.multi_reduction <add>, %334, %cst_153 [1] : vector<16x32xf32> to vector<16xf32>
    %336 = vector.shape_cast %335 : vector<16xf32> to vector<16x1xf32>
    %cst_154 = arith.constant 3.200000e+01 : f32
    %337 = vector.broadcast %cst_154 : f32 to vector<16x1xf32>
    %338 = arith.divf %336, %337 : vector<16x1xf32>
    %339 = vector.broadcast %331 : vector<16x1xf32> to vector<16x32xf32>
    %340 = arith.subf %325, %339 : vector<16x32xf32>
    %cst_155 = arith.constant 9.99999996E-13 : f32
    %341 = vector.broadcast %cst_155 : f32 to vector<16x1xf32>
    %342 = arith.addf %338, %341 : vector<16x1xf32>
    %343 = math.rsqrt %342 : vector<16x1xf32>
    %344 = vector.broadcast %343 : vector<16x1xf32> to vector<16x32xf32>
    %345 = arith.mulf %340, %344 : vector<16x32xf32>
    %346 = vector.broadcast %326 : vector<1x32xf32> to vector<16x32xf32>
    %347 = arith.mulf %345, %346 : vector<16x32xf32>
    %348 = vector.broadcast %327 : vector<1x32xf32> to vector<16x32xf32>
    %349 = arith.addf %347, %348 : vector<16x32xf32>
    %c320 = arith.constant 320 : index
    %c0_156 = arith.constant 0 : index
    %350 = vector.load %arg4[%c320, %c0_156] : memref<352x96xbf16, #tpu.memory_space<vmem>>, vector<32x32xbf16>
    %351 = arith.truncf %349 : vector<16x32xf32> to vector<16x32xbf16>
    %cst_157 = arith.constant dense<0.000000e+00> : vector<16x32xf32>
    %352 = tpu.matmul %351, %350, %cst_157 {dimension_numbers = #tpu.dot_dimension_numbers<[1], [0], [0], [1], [0, 0, 1, 1], [], []>} : vector<16x32xbf16>, vector<32x32xbf16>, vector<16x32xf32> -> vector<16x32xf32>
    %c18 = arith.constant 18 : index
    %c0_158 = arith.constant 0 : index
    %353 = vector.load %arg3[%c18, %c0_158] : memref<24x128xf32, #tpu.memory_space<vmem>>, vector<1x32xf32>
    %354 = vector.broadcast %353 : vector<1x32xf32> to vector<16x32xf32>
    %355 = arith.addf %352, %354 : vector<16x32xf32>
    %356 = math.tanh %355 : vector<16x32xf32>
    %c19 = arith.constant 19 : index
    %c0_159 = arith.constant 0 : index
    %357 = vector.load %arg3[%c19, %c0_159] : memref<24x128xf32, #tpu.memory_space<vmem>>, vector<1x32xf32>
    %358 = vector.broadcast %357 : vector<1x32xf32> to vector<16x32xf32>
    %359 = arith.mulf %356, %358 : vector<16x32xf32>
    %cst_160 = arith.constant dense<0.000000e+00> : vector<16xf32>
    %360 = vector.multi_reduction <add>, %359, %cst_160 [1] : vector<16x32xf32> to vector<16xf32>
    %361 = vector.shape_cast %360 : vector<16xf32> to vector<16x1xf32>
    %c20 = arith.constant 20 : index
    %c0_161 = arith.constant 0 : index
    %362 = vector.load %arg3[%c20, %c0_161] : memref<24x128xf32, #tpu.memory_space<vmem>>, vector<1x1xf32>
    %363 = vector.broadcast %362 : vector<1x1xf32> to vector<16x1xf32>
    %364 = arith.addf %361, %363 : vector<16x1xf32>
    %365 = arith.negf %364 : vector<16x1xf32>
    %366 = math.exp %365 : vector<16x1xf32>
    %cst_162 = arith.constant 1.000000e+00 : f32
    %367 = vector.broadcast %cst_162 : f32 to vector<16x1xf32>
    %368 = arith.addf %367, %366 : vector<16x1xf32>
    %369 = arith.divf %367, %368 : vector<16x1xf32>
    %370 = vector.shape_cast %369 : vector<16x1xf32> to vector<16x1xf32>
    %371 = vector.broadcast %370 : vector<16x1xf32> to vector<16x128xf32>
    %c0_163 = arith.constant 0 : index
    %c0_164 = arith.constant 0 : index
    %372 = vector.load %arg5[%c0_163, %c0_164] : memref<16x128xf32, #tpu.memory_space<vmem>>, vector<16x128xf32>
    tpu.vector_store %arg5[%c0_163, %c0_164], %371 {strides = array<i32>} : memref<16x128xf32, #tpu.memory_space<vmem>>, vector<16x128xf32>,
    return
  }
}

</mosaic_0001>

<llo_original>
// kernel: tile.15
$region0: #{tile.15}
  %s0 = inlined_call_operand.vmem [shape: f32[2,8], index: 0, kind: input, shape index: {}]
  %s1 = inlined_call_operand.vmem [shape: f32[16], index: 1, kind: output, shape index: {}]
  $region1: #{tile.15} parent=0
    #allocation0 [shape = 'u8[4096]{0}', space=vmem, size = 0x1000, scoped, tag = 'scoped mem for output reshape']
    #allocation1 [shape = 'u8[4096]{0}', space=vmem, size = 0x1000, scoped, tag = 'scoped mem for input reshape']
    %s3 = sshllo.u32 0, 2
    %v4 = vld [vmem:[%s0] sm:%s3]
    %5 = vst [vmem:[#allocation1] sm:%s3] %v4
    %v6 = vld [vmem:[#allocation1] sm:$0x1]
    %vm7 = vcmask 64512
    %8 = vst.msk [vmem:[#allocation0] sm:$0x1] %vm7, %v6
    %s9 = scalar_lea.vmem [#allocation1], 1
    %v10 = vld [vmem:[%s9] sm:$0x1]
    %11 = vrot.lane.b32.xlu0 %v10, 8
    %v12 = vpop.permute.xlu0 %11
    %vm13 = vcmask 130112
    %14 = vst.msk [vmem:[#allocation0] sm:$0x1] %vm13, %v12
    %s16 = sshllo.u32 0, 1
    %v18 = vld [vmem:[#allocation0] sm:%s16]
    %s19 = sshllo.u32 0, 1
    %20 = vst [vmem:[%s1] sm:%s19] %v18

// kernel: tile.16
$region0: #{tile.16}
  #allocation0 [shape = 's32[1]{0}', space=sflag, size = 0x4, scoped, tag = 'scoped memory for tile.16']
  %s0 = inlined_call_operand.vmem [shape: f32[16], index: 0, kind: input, shape index: {}]
  %s1 = inlined_call_operand.vmem [shape: f32[4,16], index: 1, kind: output, shape index: {}]
  // Predicated region
  $region2: #{tile.16} parent=0 // pred_check
    _
  $region3: #{tile.16} parent=0 // pred_check_branch
    %3 = sbr.rel (0) target = $region5
  $region4: #{tile.16} parent=0 // pred_region
    _
  $region5: #{tile.16} parent=0 // pred_fallthru
    _
  %v4 = vld [vmem:[%s0] ss:$0 sm:$0xff]
  %5 = vst [vmem:[%s1] sm:$0xf] %v4

// kernel: eq.8
$region0: #{eq.8}
  %s0 = inlined_call_operand.vmem [shape: s32[8,8], index: 0, kind: input, shape index: {}]
  %s1 = inlined_call_operand.vmem [shape: s32[64], index: 1, kind: output, shape index: {}]
  $region1: #{eq.8} parent=0
    #allocation0 [shape = 'u8[4096]{0}', space=vmem, size = 0x1000, scoped, tag = 'scoped mem for output reshape']
    %v2 = vld [vmem:[%s0] sm:$0x1]
    %vm3 = vcmask 64512
    %4 = vst.msk [vmem:[#allocation0] sm:$0x1] %vm3, %v2
    %s5 = scalar_lea.vmem %s0, 7
    %v6 = vld [vmem:[%s5] sm:$0x1]
    %7 = vrot.lane.b32.xlu0 %v6, 56
    %v8 = vpop.permute.xlu0 %7
    %vm9 = vcmask 523712
    %10 = vst.msk [vmem:[#allocation0] sm:$0x1] %vm9, %v8
    %s11 = scalar_lea.vmem %s0, 6
    %v12 = vld [vmem:[%s11] sm:$0x1]
    %13 = vrot.lane.b32.xlu0 %v12, 48
    %v14 = vpop.permute.xlu0 %13
    %vm15 = vcmask 458112
    %16 = vst.msk [vmem:[#allocation0] sm:$0x1] %vm15, %v14
    %s17 = scalar_lea.vmem %s0, 5
    %v18 = vld [vmem:[%s17] sm:$0x1]
    %19 = vrot.lane.b32.xlu0 %v18, 40
    %v20 = vpop.permute.xlu0 %19
    %vm21 = vcmask 392512
    %22 = vst.msk [vmem:[#allocation0] sm:$0x1] %vm21, %v20
    %s23 = scalar_lea.vmem %s0, 4
    %v24 = vld [vmem:[%s23] sm:$0x1]
    %25 = vrot.lane.b32.xlu0 %v24, 32
    %v26 = vpop.permute.xlu0 %25
    %vm27 = vcmask 326912
    %28 = vst.msk [vmem:[#allocation0] sm:$0x1] %vm27, %v26
    %s29 = scalar_lea.vmem %s0, 3
    %v30 = vld [vmem:[%s29] sm:$0x1]
    %31 = vrot.lane.b32.xlu0 %v30, 24
    %v32 = vpop.permute.xlu0 %31
    %vm33 = vcmask 261312
    %34 = vst.msk [vmem:[#allocation0] sm:$0x1] %vm33, %v32
    %s35 = scalar_lea.vmem %s0, 2
    %v36 = vld [vmem:[%s35] sm:$0x1]
    %37 = vrot.lane.b32.xlu0 %v36, 16
    %v38 = vpop.permute.xlu0 %37
    %vm39 = vcmask 195712
    %40 = vst.msk [vmem:[#allocation0] sm:$0x1] %vm39, %v38
    %s41 = scalar_lea.vmem %s0, 1
    %v42 = vld [vmem:[%s41] sm:$0x1]
    %43 = vrot.lane.b32.xlu0 %v42, 8
    %v44 = vpop.permute.xlu0 %43
    %vm45 = vcmask 130112
    %46 = vst.msk [vmem:[#allocation0] sm:$0x1] %vm45, %v44
    %s48 = sshllo.u32 0, 1
    %v50 = vld [vmem:[#allocation0] sm:%s48]
    %s51 = sshllo.u32 0, 1
    %52 = vst [vmem:[%s1] sm:%s51] %v50

// kernel: sentence_similarity_forward.1
$region0: #{sentence_similarity_forward.1}
  #allocation0 [shape = 'u32[]', space=smem, size = 0x4, offset = 0x4, fixed_abs, tag = 'smem constant byte address 0x4 - core index']
  #allocation1 [shape = 'u32[144,128]{1,0:T(1,128)}', space=vmem, size = 0x12000, scoped, tag = 'internal scratch']
  #allocation2 [shape = 'bf16[64,24]{1,0:T(16,128)(2,1)}', space=vmem, size = 0x4000, scoped, tag = 'scratch operand']
  #allocation3 [shape = 'f32[16,32]{1,0:T(8,128)}', space=vmem, size = 0x2000, scoped, tag = 'scratch operand']
  %s0 = inlined_call_operand.vmem [shape: s32[16,3], index: 0, kind: input, shape index: {}]
  %s1 = inlined_call_operand.vmem [shape: f32[168,32], index: 1, kind: input, shape index: {}]
  %s2 = inlined_call_operand.vmem [shape: f32[64,64], index: 2, kind: input, shape index: {}]
  %s3 = inlined_call_operand.vmem [shape: f32[24,128], index: 3, kind: input, shape index: {}]
  %s4 = inlined_call_operand.vmem [shape: bf16[352,96], index: 4, kind: input, shape index: {}]
  %s5 = inlined_call_operand.vmem [shape: f32[16,128], index: 5, kind: output, shape index: {}]
  %s6 = sld [smem:[#allocation0]]
  $region30: #{sentence_similarity_forward.1} parent=0
    _
  %s8 = ssub.s32 1, %s6
  %s9 = scalar_select 0, %s8, %s6
  // Predicated region
  $region2: #{sentence_similarity_forward.1} parent=0 // pred_check
    _
  $region3: #{sentence_similarity_forward.1} parent=0 // pred_check_branch
    %11 = sbr.rel (0) target = $region5
  $region4: #{sentence_similarity_forward.1} parent=0 // pred_region
    _
  $region5: #{sentence_similarity_forward.1} parent=0 // pred_fallthru
    _
  // Predicated region
  $region6: #{sentence_similarity_forward.1} parent=0 // pred_check
    _
  $region7: #{sentence_similarity_forward.1} parent=0 // pred_check_branch
    %13 = sbr.rel (0) target = $region9
  $region8: #{sentence_similarity_forward.1} parent=0 // pred_region
    _
  $region9: #{sentence_similarity_forward.1} parent=0 // pred_fallthru
    _
  // Predicated region
  $region10: #{sentence_similarity_forward.1} parent=0 // pred_check
    _
  $region11: #{sentence_similarity_forward.1} parent=0 // pred_check_branch
    %15 = sbr.rel (0) target = $region13
  $region12: #{sentence_similarity_forward.1} parent=0 // pred_region
    _
  $region13: #{sentence_similarity_forward.1} parent=0 // pred_fallthru
    _
  // Predicated region
  $region14: #{sentence_similarity_forward.1} parent=0 // pred_check
    _
  $region15: #{sentence_similarity_forward.1} parent=0 // pred_check_branch
    %17 = sbr.rel (0) target = $region17
  $region16: #{sentence_similarity_forward.1} parent=0 // pred_region
    _
  $region17: #{sentence_similarity_forward.1} parent=0 // pred_fallthru
    _
  // Predicated region
  $region18: #{sentence_similarity_forward.1} parent=0 // pred_check
    _
  $region19: #{sentence_similarity_forward.1} parent=0 // pred_check_branch
    %19 = sbr.rel (0) target = $region21
  $region20: #{sentence_similarity_forward.1} parent=0 // pred_region
    _
  $region21: #{sentence_similarity_forward.1} parent=0 // pred_fallthru
    _
  %v21 = vlaneseq
  %v22 = vand.u32 %v21, 127
  %v23 = vadd.s32 %v22, 128
  %v24 = vld [vmem:[%s0] sm:$0xff]
  %v25 = vld [vmem:[%s0 + $0x8] sm:$0xff]
  %26 = vset.pattern.permute.xlu0 0
  %27 = vperm.xlu0 %26, %v24
  %v28 = vpop.permute.xlu0 %27
  %29 = vset.pattern.permute.xlu0 0
  %30 = vperm.xlu0 %29, %v25
  %v31 = vpop.permute.xlu0 %30
  %vm32 = vcmp.eq.s32.totalorder %v22, %v28
  %vm33 = vcmp.eq.s32.totalorder %v23, %v28
  %vm34 = vcmp.eq.s32.totalorder %v22, %v31
  %vm35 = vcmp.eq.s32.totalorder %v23, %v31
  %v36 = vsel %vm32, 1, 0
  %v37 = vsel %vm33, 1, 0
  %v38 = vsel %vm34, 1, 0
  %v39 = vsel %vm35, 1, 0
  %v40 = vcvt.s32.f32 %v36
  %v41 = vcvt.s32.f32 %v37
  %v42 = vcvt.s32.f32 %v38
  %v43 = vcvt.s32.f32 %v39
  %44 = vset.pattern.permute.xlu0 1
  %45 = vperm.xlu0 %44, %v24
  %v46 = vpop.permute.xlu0 %45
  %47 = vset.pattern.permute.xlu0 1
  %48 = vperm.xlu0 %47, %v25
  %v49 = vpop.permute.xlu0 %48
  %vm50 = vcmp.eq.s32.totalorder %v22, %v46
  %vm51 = vcmp.eq.s32.totalorder %v23, %v46
  %vm52 = vcmp.eq.s32.totalorder %v22, %v49
  %vm53 = vcmp.eq.s32.totalorder %v23, %v49
  %v54 = vsel %vm50, 1, 0
  %v55 = vsel %vm51, 1, 0
  %v56 = vsel %vm52, 1, 0
  %v57 = vsel %vm53, 1, 0
  %v58 = vcvt.s32.f32 %v54
  %v59 = vcvt.s32.f32 %v55
  %v60 = vcvt.s32.f32 %v56
  %v61 = vcvt.s32.f32 %v57
  %v62 = vadd.f32 %v40, %v58
  %v63 = vadd.f32 %v41, %v59
  %v64 = vadd.f32 %v42, %v60
  %v65 = vadd.f32 %v43, %v61
  %66 = vset.pattern.permute.xlu0 2
  %67 = vperm.xlu0 %66, %v24
  %v68 = vpop.permute.xlu0 %67
  %69 = vset.pattern.permute.xlu0 2
  %70 = vperm.xlu0 %69, %v25
  %v71 = vpop.permute.xlu0 %70
  %vm72 = vcmp.eq.s32.totalorder %v22, %v68
  %vm73 = vcmp.eq.s32.totalorder %v23, %v68
  %vm74 = vcmp.eq.s32.totalorder %v22, %v71
  %vm75 = vcmp.eq.s32.totalorder %v23, %v71
  %v76 = vsel %vm72, 1, 0
  %v77 = vsel %vm73, 1, 0
  %v78 = vsel %vm74, 1, 0
  %v79 = vsel %vm75, 1, 0
  %v80 = vcvt.s32.f32 %v76
  %v81 = vcvt.s32.f32 %v77
  %v82 = vcvt.s32.f32 %v78
  %v83 = vcvt.s32.f32 %v79
  %v84 = vadd.f32 %v62, %v80
  %v85 = vadd.f32 %v63, %v81
  %v86 = vadd.f32 %v64, %v82
  %v87 = vadd.f32 %v65, %v83
  %v88 = vld [vmem:[%s1] sm:$0xff]
  %v89 = vld [vmem:[%s1 + $0x8] sm:$0xff]
  %v90 = vld [vmem:[%s1 + $0x10] sm:$0xff]
  %v91 = vld [vmem:[%s1 + $0x18] sm:$0xff]
  %v92 = vld [vmem:[%s1 + $0x20] sm:$0xff]
  %v93 = vld [vmem:[%s1 + $0x28] sm:$0xff]
  %v94 = vld [vmem:[%s1 + $0x30] sm:$0xff]
  %v95 = vld [vmem:[%s1 + $0x38] sm:$0xff]
  %v96 = vld [vmem:[%s1 + $0x40] sm:$0xff]
  %v97 = vld [vmem:[%s1 + $0x48] sm:$0xff]
  %v98 = vld [vmem:[%s1 + $0x50] sm:$0xff]
  %v99 = vld [vmem:[%s1 + $0x58] sm:$0xff]
  %v100 = vld [vmem:[%s1 + $0x60] sm:$0xff]
  %v101 = vld [vmem:[%s1 + $0x68] sm:$0xff]
  %v102 = vld [vmem:[%s1 + $0x70] sm:$0xff]
  %v103 = vld [vmem:[%s1 + $0x78] sm:$0xff]
  %v104 = vld [vmem:[%s1 + $0x80] sm:$0xff]
  %v105 = vld [vmem:[%s1 + $0x88] sm:$0xff]
  %v106 = vld [vmem:[%s1 + $0x90] sm:$0xff]
  %v107 = vld [vmem:[%s1 + $0x98] sm:$0xff]
  %v108 = vld [vmem:[%s1 + $0xa0] sm:$0xff]
  %vm109 = vcmask 326656
  %v111 = vsel %vm109, %v85, 0
  %v114 = vsel %vm109, %v87, 0
  %116 = vmatprep.subr.mxu0 0.0
  %117 = vmatpush1.msra.mxu0 %v88
  %118 = vmatprep.subr.mxu0 0.0
  %119 = vmatpush1.msra.mxu0 %v89
  %120 = vmatprep.subr.mxu0 0.0
  %121 = vmatpush1.msra.mxu0 %v90
  %122 = vmatprep.subr.mxu0 0.0
  %123 = vmatpush1.msra.mxu0 %v91
  %124 = vmatprep.subr.mxu0 0.0
  %125 = vmatpush1.msra.mxu0 %v92
  %126 = vmatprep.subr.mxu0 0.0
  %127 = vmatpush1.msra.mxu0 %v93
  %128 = vmatprep.subr.mxu0 0.0
  %129 = vmatpush1.msra.mxu0 %v94
  %130 = vmatprep.subr.mxu0 0.0
  %131 = vmatpush1.msra.mxu0 %v95
  %132 = vmatprep.subr.mxu0 0.0
  %133 = vmatpush1.msra.mxu0 %v96
  %134 = vmatprep.subr.mxu0 0.0
  %135 = vmatpush1.msra.mxu0 %v97
  %136 = vmatprep.subr.mxu0 0.0
  %137 = vmatpush1.msra.mxu0 %v98
  %138 = vmatprep.subr.mxu0 0.0
  %139 = vmatpush1.msra.mxu0 %v99
  %140 = vmatprep.subr.mxu0 0.0
  %141 = vmatpush1.msra.mxu0 %v100
  %142 = vmatprep.subr.mxu0 0.0
  %143 = vmatpush1.msra.mxu0 %v101
  %144 = vmatprep.subr.mxu0 0.0
  %145 = vmatpush1.msra.mxu0 %v102
  %146 = vmatprep.subr.mxu0 0.0
  %147 = vmatpush1.msra.mxu0 %v103
  %148 = vmatprep.subr.mxu0 0.0
  %149 = vmatpush1.msra.mxu0 %v104
  %150 = vmatprep.subr.mxu0 0.0
  %151 = vmatpush1.msra.mxu0 %v105
  %152 = vmatprep.subr.mxu0 0.0
  %153 = vmatpush1.msra.mxu0 %v106
  %154 = vmatprep.subr.mxu0 0.0
  %155 = vmatpush1.msra.mxu0 %v107
  %156 = vmatprep.subr.mxu0 0.0
  %157 = vmatpush1.msra.mxu0 %v108
  %158 = vmatprep.subr.mxu0 0.0
  %159 = vmatpush1.msra.mxu0 0.0
  %160 = vmatprep.subr.mxu0 0.0
  %161 = vmatpush1.msra.mxu0 0.0
  %162 = vmatprep.subr.mxu0 0.0
  %163 = vmatpush1.msra.mxu0 0.0
  %164 = vmatprep.subr.mxu0 0.0
  %165 = vmatpush1.msra.mxu0 0.0
  %166 = vmatprep.subr.mxu0 0.0
  %167 = vmatpush1.msra.mxu0 0.0
  %168 = vmatprep.subr.mxu0 0.0
  %169 = vmatpush1.msra.mxu0 0.0
  %170 = vmatprep.subr.mxu0 0.0
  %171 = vmatpush1.msra.mxu0 0.0
  %172 = vmatprep.subr.mxu0 0.0
  %173 = vmatpush1.msra.mxu0 0.0
  %174 = vmatprep.subr.mxu0 0.0
  %175 = vmatpush1.msra.mxu0 0.0
  %176 = vmatprep.subr.mxu0 0.0
  %177 = vmatpush1.msra.mxu0 0.0
  %178 = vmatprep.subr.mxu0 0.0
  %179 = vmatpush1.msra.mxu0 0.0
  %180 = vmatprep.mubr.f32.mxu0 %v111
  %181 = vmatmul.mubr.f32.gmra.mrb[0].mxu0 %v84
  %v182 = vpop.f32.mrb[0].mxu0
  %v183 = vadd.f32 0.0, %v182
  %v184 = vpop.f32.mrb[0].mxu0
  %185 = vmatprep.mubr.f32.mxu0 %v114
  %186 = vmatmul.mubr.f32.gmra.mrb[0].mxu0 %v86
  %v187 = vpop.f32.mrb[0].mxu0
  %v188 = vadd.f32 0.0, %v187
  %v189 = vpop.f32.mrb[0].mxu0
  %190 = vdwg.mxu0
  %v191 = vld [vmem:[%s3] sm:$0x1]
  %v192 = vld [vmem:[%s3 + $0x1] sm:$0x1]
  %vm193 = vcmask 261120
  %v194 = vsel %vm193, %v183, 0.0
  %195 = vadd.xlane.f32.xlu0 %v194
  %v196 = vpop.xlane.xlu0 %195
  %v197 = vsel %vm193, %v188, 0.0
  %198 = vadd.xlane.f32.xlu0 %v197
  %v199 = vpop.xlane.xlu0 %198
  %v200 = vrcp.pop 32.0
  %v201 = vmul.f32 %v196, %v200
  %v202 = vmul.f32 %v199, %v200
  %v203 = vsub.f32 %v183, %v201
  %v204 = vsub.f32 %v188, %v202
  %v205 = vmul.f32 %v203, %v203
  %v206 = vmul.f32 %v204, %v204
  %v207 = vsel %vm193, %v205, 0.0
  %208 = vadd.xlane.f32.xlu0 %v207
  %v209 = vpop.xlane.xlu0 %208
  %v210 = vsel %vm193, %v206, 0.0
  %211 = vadd.xlane.f32.xlu0 %v210
  %v212 = vpop.xlane.xlu0 %211
  %v213 = vmul.f32 %v209, %v200
  %v214 = vmul.f32 %v212, %v200
  %v215 = vadd.f32 %v213, 1e-12
  %v216 = vadd.f32 %v214, 1e-12
  %v217 = vrsqrt.pop %v215
  %v218 = vrsqrt.pop %v216
  %v219 = vmul.f32 %v203, %v217
  %v220 = vmul.f32 %v204, %v218
  %v221 = vlaneseq
  %v222 = vshrl.u32 %v221, 7
  %v223 = vsub.s32 0, %v222
  %v224 = vrot.slane %v191, %v223
  %v225 = vmul.f32 %v219, %v224
  %v226 = vmul.f32 %v220, %v224
  %v227 = vlaneseq
  %v228 = vshrl.u32 %v227, 7
  %v229 = vsub.s32 0, %v228
  %v230 = vrot.slane %v192, %v229
  %v231 = vadd.f32 %v225, %v230
  %v232 = vadd.f32 %v226, %v230
  %v233 = vld [vmem:[%s4] sm:$0xf]
  %v234 = vld [vmem:[%s4 + $0x4] sm:$0xf]
  %v235 = vld [vmem:[%s4 + $0x8] sm:$0xf]
  %v236 = vld [vmem:[%s4 + $0xc] sm:$0xf]
  %v237 = vpack.c.bf16 %v232, %v231
  %v238 = vld [vmem:[%s3 + $0x2] sm:$0x1]
  %v239 = vlaneseq
  %v240 = vshrl.u32 %v239, 7
  %v241 = vsub.s32 0, %v240
  %v242 = vrot.slane %v238, %v241
  %v247 = vunpack.c.l.b16 %v233
  %v248 = vunpack.c.l.b16 %v234
  %v249 = vunpack.c.l.b16 %v235
  %v250 = vunpack.c.l.b16 %v236
  %v251 = vpack.c.b16 %v248, %v247
  %v252 = vpack.c.b16 %v250, %v249
  %v256 = vsel %vm193, %v237, 0
  %258 = vmatprep.subr.bf16.mxu0 0
  %259 = vmatpush1.bf16.msra.mxu0 %v251
  %260 = vmatprep.subr.bf16.mxu0 0
  %261 = vmatpush1.bf16.msra.mxu0 %v252
  %262 = vmatprep.subr.bf16.mxu0 0
  %263 = vmatpush1.bf16.msra.mxu0 0
  %264 = vmatprep.subr.bf16.mxu0 0
  %265 = vmatpush1.bf16.msra.mxu0 0
  %266 = vmatprep.subr.bf16.mxu0 0
  %267 = vmatpush1.bf16.msra.mxu0 0
  %268 = vmatprep.subr.bf16.mxu0 0
  %269 = vmatpush1.bf16.msra.mxu0 0
  %270 = vmatprep.subr.bf16.mxu0 0
  %271 = vmatpush1.bf16.msra.mxu0 0
  %272 = vmatprep.subr.bf16.mxu0 0
  %273 = vmatpush1.bf16.msra.mxu0 0
  %274 = vmatprep.subr.bf16.mxu0 0
  %275 = vmatpush1.bf16.msra.mxu0 0
  %276 = vmatprep.subr.bf16.mxu0 0
  %277 = vmatpush1.bf16.msra.mxu0 0
  %278 = vmatprep.subr.bf16.mxu0 0
  %279 = vmatpush1.bf16.msra.mxu0 0
  %280 = vmatprep.subr.bf16.mxu0 0
  %281 = vmatpush1.bf16.msra.mxu0 0
  %282 = vmatprep.subr.bf16.mxu0 0
  %283 = vmatpush1.bf16.msra.mxu0 0
  %284 = vmatprep.subr.bf16.mxu0 0
  %285 = vmatpush1.bf16.msra.mxu0 0
  %286 = vmatprep.subr.bf16.mxu0 0
  %287 = vmatpush1.bf16.msra.mxu0 0
  %288 = vmatprep.subr.bf16.mxu0 0
  %289 = vmatpush1.bf16.msra.mxu0 0
  %290 = vmatprep.mubr.bf16.mxu0 0
  %291 = vmatmul.mubr.bf16.gmra.mrb[0].mxu0 %v256
  %v292 = vpop.f32.mrb[0].mxu0
  %v293 = vadd.f32 %v242, %v292
  %v294 = vpop.f32.mrb[0].mxu0
  %v295 = vpop.f32.mrb[0].mxu0
  %v296 = vadd.f32 %v242, %v295
  %v297 = vpop.f32.mrb[0].mxu0
  %298 = vdwg.mxu0
  %v299 = vpack.c.bf16 %v296, %v293
  %vm300 = vcmask 195584
  %301 = vst.msk [vmem:[#allocation2] sm:$0xff] %vm300, %v299
  %303 = vrot.lane.b32.xlu0 %v299, 104
  %v304 = vpop.permute.xlu0 %303
  %306 = vst.msk [vmem:[#allocation2 + $0x8] sm:$0xff] %vm300, %v304
  %307 = vrot.lane.b32.xlu0 %v299, 80
  %v308 = vpop.permute.xlu0 %307
  %310 = vst.msk [vmem:[#allocation2 + $0x10] sm:$0xff] %vm300, %v308
  %311 = vrot.lane.b32.xlu0 %v299, 56
  %v312 = vpop.permute.xlu0 %311
  %314 = vst.msk [vmem:[#allocation2 + $0x18] sm:$0xff] %vm300, %v312
  %v315 = vld [vmem:[#allocation2] sm:$0xff]
  %v316 = vld [vmem:[#allocation2 + $0x8] sm:$0xff]
  %v317 = vld [vmem:[#allocation2 + $0x10] sm:$0xff]
  %v318 = vld [vmem:[#allocation2 + $0x18] sm:$0xff]
  %v319 = vld [vmem:[%s2] sm:$0xff]
  %v320 = vld [vmem:[%s2 + $0x8] sm:$0xff]
  %v321 = vld [vmem:[%s2 + $0x10] sm:$0xff]
  %v322 = vld [vmem:[%s2 + $0x18] sm:$0xff]
  %v323 = vld [vmem:[%s2 + $0x20] sm:$0xff]
  %v324 = vld [vmem:[%s2 + $0x28] sm:$0xff]
  %v325 = vld [vmem:[%s2 + $0x30] sm:$0xff]
  %v326 = vld [vmem:[%s2 + $0x38] sm:$0xff]
  %331 = vrot.lane.b32.xlu0 %v315, 120
  %v332 = vpop.permute.xlu0 %331
  %333 = vrot.lane.b32.xlu0 %v316, 120
  %v334 = vpop.permute.xlu0 %333
  %335 = vrot.lane.b32.xlu0 %v317, 120
  %v336 = vpop.permute.xlu0 %335
  %337 = vrot.lane.b32.xlu0 %v318, 120
  %v338 = vpop.permute.xlu0 %337
  %vm339 = vcmask 64512
  %v341 = vsel %vm339, %v315, 0
  %v344 = vsel %vm339, %v316, 0
  %v347 = vsel %vm339, %v317, 0
  %v350 = vsel %vm339, %v318, 0
  %v353 = vsel %vm339, %v332, 0
  %v356 = vsel %vm339, %v334, 0
  %v359 = vsel %vm339, %v336, 0
  %v362 = vsel %vm339, %v338, 0
  %364 = vmatprep.subr.bf16.mxu0 0
  %365 = vmatpush1.bf16.xpose.msra.mxu0 %v353
  %366 = vmatprep.subr.bf16.mxu0 0
  %367 = vmatpush1.bf16.xpose.msra.mxu0 %v356
  %368 = vmatprep.subr.bf16.mxu0 0
  %369 = vmatpush1.bf16.xpose.msra.mxu0 %v359
  %370 = vmatprep.subr.bf16.mxu0 0
  %371 = vmatpush1.bf16.xpose.msra.mxu0 %v362
  %372 = vmatprep.subr.bf16.mxu0 0
  %373 = vmatpush1.bf16.xpose.msra.mxu0 0
  %374 = vmatprep.subr.bf16.mxu0 0
  %375 = vmatpush1.bf16.xpose.msra.mxu0 0
  %376 = vmatprep.subr.bf16.mxu0 0
  %377 = vmatpush1.bf16.xpose.msra.mxu0 0
  %378 = vmatprep.subr.bf16.mxu0 0
  %379 = vmatpush1.bf16.xpose.msra.mxu0 0
  %380 = vmatprep.subr.bf16.mxu0 0
  %381 = vmatpush1.bf16.xpose.msra.mxu0 0
  %382 = vmatprep.subr.bf16.mxu0 0
  %383 = vmatpush1.bf16.xpose.msra.mxu0 0
  %384 = vmatprep.subr.bf16.mxu0 0
  %385 = vmatpush1.bf16.xpose.msra.mxu0 0
  %386 = vmatprep.subr.bf16.mxu0 0
  %387 = vmatpush1.bf16.xpose.msra.mxu0 0
  %388 = vmatprep.subr.bf16.mxu0 0
  %389 = vmatpush1.bf16.xpose.msra.mxu0 0
  %390 = vmatprep.subr.bf16.mxu0 0
  %391 = vmatpush1.bf16.xpose.msra.mxu0 0
  %392 = vmatprep.subr.bf16.mxu0 0
  %393 = vmatpush1.bf16.xpose.msra.mxu0 0
  %394 = vmatprep.subr.bf16.mxu0 0
  %395 = vmatpush1.bf16.xpose.msra.mxu0 0
  %396 = vmatprep.mubr.bf16.mxu0 0
  %397 = vmatmul.mubr.bf16.gmra.mrb[0].mxu0 %v341
  %v398 = vpop.f32.mrb[0].mxu0
  %v399 = vadd.f32 %v319, %v398
  %v400 = vpop.f32.mrb[0].mxu0
  %v401 = vpop.f32.mrb[0].mxu0
  %v402 = vadd.f32 %v320, %v401
  %v403 = vpop.f32.mrb[0].mxu0
  %404 = vmatprep.mubr.bf16.mxu0 0
  %405 = vmatmul.mubr.bf16.gmra.mrb[0].mxu0 %v344
  %v406 = vpop.f32.mrb[0].mxu0
  %v407 = vadd.f32 %v321, %v406
  %v408 = vpop.f32.mrb[0].mxu0
  %v409 = vpop.f32.mrb[0].mxu0
  %v410 = vadd.f32 %v322, %v409
  %v411 = vpop.f32.mrb[0].mxu0
  %412 = vmatprep.mubr.bf16.mxu0 0
  %413 = vmatmul.mubr.bf16.gmra.mrb[0].mxu0 %v347
  %v414 = vpop.f32.mrb[0].mxu0
  %v415 = vadd.f32 %v323, %v414
  %v416 = vpop.f32.mrb[0].mxu0
  %v417 = vpop.f32.mrb[0].mxu0
  %v418 = vadd.f32 %v324, %v417
  %v419 = vpop.f32.mrb[0].mxu0
  %420 = vmatprep.mubr.bf16.mxu0 0
  %421 = vmatmul.mubr.bf16.gmra.mrb[0].mxu0 %v350
  %v422 = vpop.f32.mrb[0].mxu0
  %v423 = vadd.f32 %v325, %v422
  %v424 = vpop.f32.mrb[0].mxu0
  %v425 = vpop.f32.mrb[0].mxu0
  %v426 = vadd.f32 %v326, %v425
  %v427 = vpop.f32.mrb[0].mxu0
  %428 = vdwg.mxu0
  %vm429 = vcmask 523264
  %v430 = vsel %vm429, %v399, -inf
  %431 = vmax.xlane.f32.xlu0 %v430
  %v432 = vpop.xlane.xlu0 %431
  %v433 = vsel %vm429, %v402, -inf
  %434 = vmax.xlane.f32.xlu0 %v433
  %v435 = vpop.xlane.xlu0 %434
  %v436 = vsel %vm429, %v407, -inf
  %437 = vmax.xlane.f32.xlu0 %v436
  %v438 = vpop.xlane.xlu0 %437
  %v439 = vsel %vm429, %v410, -inf
  %440 = vmax.xlane.f32.xlu0 %v439
  %v441 = vpop.xlane.xlu0 %440
  %v442 = vsel %vm429, %v415, -inf
  %443 = vmax.xlane.f32.xlu0 %v442
  %v444 = vpop.xlane.xlu0 %443
  %v445 = vsel %vm429, %v418, -inf
  %446 = vmax.xlane.f32.xlu0 %v445
  %v447 = vpop.xlane.xlu0 %446
  %v448 = vsel %vm429, %v423, -inf
  %449 = vmax.xlane.f32.xlu0 %v448
  %v450 = vpop.xlane.xlu0 %449
  %v451 = vsel %vm429, %v426, -inf
  %452 = vmax.xlane.f32.xlu0 %v451
  %v453 = vpop.xlane.xlu0 %452
  %v454 = vsub.f32 %v399, %v432
  %v455 = vsub.f32 %v402, %v435
  %v456 = vsub.f32 %v407, %v438
  %v457 = vsub.f32 %v410, %v441
  %v458 = vsub.f32 %v415, %v444
  %v459 = vsub.f32 %v418, %v447
  %v460 = vsub.f32 %v423, %v450
  %v461 = vsub.f32 %v426, %v453
  %v462 = vmul.f32 %v454, 1.442695
  %v463 = vpow.pop %v462
  %v464 = vmul.f32 %v455, 1.442695
  %v465 = vpow.pop %v464
  %v466 = vmul.f32 %v456, 1.442695
  %v467 = vpow.pop %v466
  %v468 = vmul.f32 %v457, 1.442695
  %v469 = vpow.pop %v468
  %v470 = vmul.f32 %v458, 1.442695
  %v471 = vpow.pop %v470
  %v472 = vmul.f32 %v459, 1.442695
  %v473 = vpow.pop %v472
  %v474 = vmul.f32 %v460, 1.442695
  %v475 = vpow.pop %v474
  %v476 = vmul.f32 %v461, 1.442695
  %v477 = vpow.pop %v476
  %v478 = vsel %vm429, %v463, 0.0
  %479 = vadd.xlane.f32.xlu0 %v478
  %v480 = vpop.xlane.xlu0 %479
  %v481 = vsel %vm429, %v465, 0.0
  %482 = vadd.xlane.f32.xlu0 %v481
  %v483 = vpop.xlane.xlu0 %482
  %v484 = vsel %vm429, %v467, 0.0
  %485 = vadd.xlane.f32.xlu0 %v484
  %v486 = vpop.xlane.xlu0 %485
  %v487 = vsel %vm429, %v469, 0.0
  %488 = vadd.xlane.f32.xlu0 %v487
  %v489 = vpop.xlane.xlu0 %488
  %v490 = vsel %vm429, %v471, 0.0
  %491 = vadd.xlane.f32.xlu0 %v490
  %v492 = vpop.xlane.xlu0 %491
  %v493 = vsel %vm429, %v473, 0.0
  %494 = vadd.xlane.f32.xlu0 %v493
  %v495 = vpop.xlane.xlu0 %494
  %v496 = vsel %vm429, %v475, 0.0
  %497 = vadd.xlane.f32.xlu0 %v496
  %v498 = vpop.xlane.xlu0 %497
  %v499 = vsel %vm429, %v477, 0.0
  %500 = vadd.xlane.f32.xlu0 %v499
  %v501 = vpop.xlane.xlu0 %500
  %v502 = vrcp.pop %v480
  %v503 = vrcp.pop %v483
  %v504 = vrcp.pop %v486
  %v505 = vrcp.pop %v489
  %v506 = vrcp.pop %v492
  %v507 = vrcp.pop %v495
  %v508 = vrcp.pop %v498
  %v509 = vrcp.pop %v501
  %v510 = vmul.f32 %v463, %v502
  %v511 = vmul.f32 %v465, %v503
  %v512 = vmul.f32 %v467, %v504
  %v513 = vmul.f32 %v469, %v505
  %v514 = vmul.f32 %v471, %v506
  %v515 = vmul.f32 %v473, %v507
  %v516 = vmul.f32 %v475, %v508
  %v517 = vmul.f32 %v477, %v509
  %v518 = vpack.c.bf16 %v511, %v510
  %v519 = vpack.c.bf16 %v513, %v512
  %v520 = vpack.c.bf16 %v515, %v514
  %v521 = vpack.c.bf16 %v517, %v516
  %522 = vrot.lane.b32.xlu0 %v315, 112
  %v523 = vpop.permute.xlu0 %522
  %524 = vrot.lane.b32.xlu0 %v316, 112
  %v525 = vpop.permute.xlu0 %524
  %526 = vrot.lane.b32.xlu0 %v317, 112
  %v527 = vpop.permute.xlu0 %526
  %528 = vrot.lane.b32.xlu0 %v318, 112
  %v529 = vpop.permute.xlu0 %528
  %v535 = vsel %vm429, %v518, 0
  %v538 = vsel %vm429, %v519, 0
  %v541 = vsel %vm429, %v520, 0
  %v544 = vsel %vm429, %v521, 0
  %546 = vmatprep.subr.bf16.mxu0 0
  %547 = vmatpush1.bf16.msra.mxu0 %v523
  %548 = vmatprep.subr.bf16.mxu0 0
  %549 = vmatpush1.bf16.msra.mxu0 %v525
  %550 = vmatprep.subr.bf16.mxu0 0
  %551 = vmatpush1.bf16.msra.mxu0 %v527
  %552 = vmatprep.subr.bf16.mxu0 0
  %553 = vmatpush1.bf16.msra.mxu0 %v529
  %554 = vmatprep.subr.bf16.mxu0 0
  %555 = vmatpush1.bf16.msra.mxu0 0
  %556 = vmatprep.subr.bf16.mxu0 0
  %557 = vmatpush1.bf16.msra.mxu0 0
  %558 = vmatprep.subr.bf16.mxu0 0
  %559 = vmatpush1.bf16.msra.mxu0 0
  %560 = vmatprep.subr.bf16.mxu0 0
  %561 = vmatpush1.bf16.msra.mxu0 0
  %562 = vmatprep.subr.bf16.mxu0 0
  %563 = vmatpush1.bf16.msra.mxu0 0
  %564 = vmatprep.subr.bf16.mxu0 0
  %565 = vmatpush1.bf16.msra.mxu0 0
  %566 = vmatprep.subr.bf16.mxu0 0
  %567 = vmatpush1.bf16.msra.mxu0 0
  %568 = vmatprep.subr.bf16.mxu0 0
  %569 = vmatpush1.bf16.msra.mxu0 0
  %570 = vmatprep.subr.bf16.mxu0 0
  %571 = vmatpush1.bf16.msra.mxu0 0
  %572 = vmatprep.subr.bf16.mxu0 0
  %573 = vmatpush1.bf16.msra.mxu0 0
  %574 = vmatprep.subr.bf16.mxu0 0
  %575 = vmatpush1.bf16.msra.mxu0 0
  %576 = vmatprep.subr.bf16.mxu0 0
  %577 = vmatpush1.bf16.msra.mxu0 0
  %578 = vmatprep.mubr.bf16.mxu0 0
  %579 = vmatmul.mubr.bf16.gmra.mrb[0].mxu0 %v535
  %v580 = vpop.f32.mrb[0].mxu0
  %v581 = vadd.f32 0.0, %v580
  %v582 = vpop.f32.mrb[0].mxu0
  %v583 = vpop.f32.mrb[0].mxu0
  %v584 = vadd.f32 0.0, %v583
  %v585 = vpop.f32.mrb[0].mxu0
  %586 = vmatprep.mubr.bf16.mxu0 0
  %587 = vmatmul.mubr.bf16.gmra.mrb[0].mxu0 %v538
  %v588 = vpop.f32.mrb[0].mxu0
  %v589 = vadd.f32 0.0, %v588
  %v590 = vpop.f32.mrb[0].mxu0
  %v591 = vpop.f32.mrb[0].mxu0
  %v592 = vadd.f32 0.0, %v591
  %v593 = vpop.f32.mrb[0].mxu0
  %594 = vmatprep.mubr.bf16.mxu0 0
  %595 = vmatmul.mubr.bf16.gmra.mrb[0].mxu0 %v541
  %v596 = vpop.f32.mrb[0].mxu0
  %v597 = vadd.f32 0.0, %v596
  %v598 = vpop.f32.mrb[0].mxu0
  %v599 = vpop.f32.mrb[0].mxu0
  %v600 = vadd.f32 0.0, %v599
  %v601 = vpop.f32.mrb[0].mxu0
  %602 = vmatprep.mubr.bf16.mxu0 0
  %603 = vmatmul.mubr.bf16.gmra.mrb[0].mxu0 %v544
  %v604 = vpop.f32.mrb[0].mxu0
  %v605 = vadd.f32 0.0, %v604
  %v606 = vpop.f32.mrb[0].mxu0
  %v607 = vpop.f32.mrb[0].mxu0
  %v608 = vadd.f32 0.0, %v607
  %v609 = vpop.f32.mrb[0].mxu0
  %610 = vdwg.mxu0
  %611 = vst.msk [vmem:[#allocation3] sm:$0xff] %vm339, %v581
  %612 = vst.msk [vmem:[#allocation3 + $0x8] sm:$0xff] %vm339, %v584
  %615 = vrot.lane.b32.xlu0 %v589, 8
  %v616 = vpop.permute.xlu0 %615
  %617 = vrot.lane.b32.xlu0 %v592, 8
  %v618 = vpop.permute.xlu0 %617
  %vm621 = vcmask 130112
  %622 = vst.msk [vmem:[#allocation3] sm:$0xff] %vm621, %v616
  %623 = vst.msk [vmem:[#allocation3 + $0x8] sm:$0xff] %vm621, %v618
  %626 = vrot.lane.b32.xlu0 %v597, 16
  %v627 = vpop.permute.xlu0 %626
  %628 = vrot.lane.b32.xlu0 %v600, 16
  %v629 = vpop.permute.xlu0 %628
  %vm632 = vcmask 195712
  %633 = vst.msk [vmem:[#allocation3] sm:$0xff] %vm632, %v627
  %634 = vst.msk [vmem:[#allocation3 + $0x8] sm:$0xff] %vm632, %v629
  %637 = vrot.lane.b32.xlu0 %v605, 24
  %v638 = vpop.permute.xlu0 %637
  %639 = vrot.lane.b32.xlu0 %v608, 24
  %v640 = vpop.permute.xlu0 %639
  %vm643 = vcmask 261312
  %644 = vst.msk [vmem:[#allocation3] sm:$0xff] %vm643, %v638
  %645 = vst.msk [vmem:[#allocation3 + $0x8] sm:$0xff] %vm643, %v640
  %v646 = vld [vmem:[%s4 + $0x20] sm:$0xf]
  %v647 = vld [vmem:[%s4 + $0x24] sm:$0xf]
  %v648 = vld [vmem:[%s4 + $0x28] sm:$0xf]
  %v649 = vld [vmem:[%s4 + $0x2c] sm:$0xf]
  %v650 = vld [vmem:[#allocation3] sm:$0xff]
  %v651 = vld [vmem:[#allocation3 + $0x8] sm:$0xff]
  %v652 = vpack.c.bf16 %v651, %v650
  %v653 = vld [vmem:[%s3 + $0x3] sm:$0x1]
  %v654 = vlaneseq
  %v655 = vshrl.u32 %v654, 7
  %v656 = vsub.s32 0, %v655
  %v657 = vrot.slane %v653, %v656
  %v662 = vunpack.c.l.b16 %v646
  %v663 = vunpack.c.l.b16 %v647
  %v664 = vunpack.c.l.b16 %v648
  %v665 = vunpack.c.l.b16 %v649
  %v666 = vpack.c.b16 %v663, %v662
  %v667 = vpack.c.b16 %v665, %v664
  %v671 = vsel %vm193, %v652, 0
  %673 = vmatprep.subr.bf16.mxu0 0
  %674 = vmatpush1.bf16.msra.mxu0 %v666
  %675 = vmatprep.subr.bf16.mxu0 0
  %676 = vmatpush1.bf16.msra.mxu0 %v667
  %677 = vmatprep.subr.bf16.mxu0 0
  %678 = vmatpush1.bf16.msra.mxu0 0
  %679 = vmatprep.subr.bf16.mxu0 0
  %680 = vmatpush1.bf16.msra.mxu0 0
  %681 = vmatprep.subr.bf16.mxu0 0
  %682 = vmatpush1.bf16.msra.mxu0 0
  %683 = vmatprep.subr.bf16.mxu0 0
  %684 = vmatpush1.bf16.msra.mxu0 0
  %685 = vmatprep.subr.bf16.mxu0 0
  %686 = vmatpush1.bf16.msra.mxu0 0
  %687 = vmatprep.subr.bf16.mxu0 0
  %688 = vmatpush1.bf16.msra.mxu0 0
  %689 = vmatprep.subr.bf16.mxu0 0
  %690 = vmatpush1.bf16.msra.mxu0 0
  %691 = vmatprep.subr.bf16.mxu0 0
  %692 = vmatpush1.bf16.msra.mxu0 0
  %693 = vmatprep.subr.bf16.mxu0 0
  %694 = vmatpush1.bf16.msra.mxu0 0
  %695 = vmatprep.subr.bf16.mxu0 0
  %696 = vmatpush1.bf16.msra.mxu0 0
  %697 = vmatprep.subr.bf16.mxu0 0
  %698 = vmatpush1.bf16.msra.mxu0 0
  %699 = vmatprep.subr.bf16.mxu0 0
  %700 = vmatpush1.bf16.msra.mxu0 0
  %701 = vmatprep.subr.bf16.mxu0 0
  %702 = vmatpush1.bf16.msra.mxu0 0
  %703 = vmatprep.subr.bf16.mxu0 0
  %704 = vmatpush1.bf16.msra.mxu0 0
  %705 = vmatprep.mubr.bf16.mxu0 0
  %706 = vmatmul.mubr.bf16.gmra.mrb[0].mxu0 %v671
  %v707 = vpop.f32.mrb[0].mxu0
  %v708 = vadd.f32 %v657, %v707
  %v709 = vpop.f32.mrb[0].mxu0
  %v710 = vpop.f32.mrb[0].mxu0
  %v711 = vadd.f32 %v657, %v710
  %v712 = vpop.f32.mrb[0].mxu0
  %713 = vdwg.mxu0
  %v714 = vadd.f32 %v231, %v708
  %v715 = vadd.f32 %v232, %v711
  %v716 = vld [vmem:[%s3 + $0x4] sm:$0x1]
  %v717 = vld [vmem:[%s3 + $0x5] sm:$0x1]
  %v718 = vsel %vm193, %v714, 0.0
  %719 = vadd.xlane.f32.xlu0 %v718
  %v720 = vpop.xlane.xlu0 %719
  %v721 = vsel %vm193, %v715, 0.0
  %722 = vadd.xlane.f32.xlu0 %v721
  %v723 = vpop.xlane.xlu0 %722
  %v724 = vmul.f32 %v720, %v200
  %v725 = vmul.f32 %v723, %v200
  %v726 = vsub.f32 %v714, %v724
  %v727 = vsub.f32 %v715, %v725
  %v728 = vmul.f32 %v726, %v726
  %v729 = vmul.f32 %v727, %v727
  %v730 = vsel %vm193, %v728, 0.0
  %731 = vadd.xlane.f32.xlu0 %v730
  %v732 = vpop.xlane.xlu0 %731
  %v733 = vsel %vm193, %v729, 0.0
  %734 = vadd.xlane.f32.xlu0 %v733
  %v735 = vpop.xlane.xlu0 %734
  %v736 = vmul.f32 %v732, %v200
  %v737 = vmul.f32 %v735, %v200
  %v738 = vadd.f32 %v736, 1e-12
  %v739 = vadd.f32 %v737, 1e-12
  %v740 = vrsqrt.pop %v738
  %v741 = vrsqrt.pop %v739
  %v742 = vmul.f32 %v726, %v740
  %v743 = vmul.f32 %v727, %v741
  %v744 = vlaneseq
  %v745 = vshrl.u32 %v744, 7
  %v746 = vsub.s32 0, %v745
  %v747 = vrot.slane %v716, %v746
  %v748 = vmul.f32 %v742, %v747
  %v749 = vmul.f32 %v743, %v747
  %v750 = vlaneseq
  %v751 = vshrl.u32 %v750, 7
  %v752 = vsub.s32 0, %v751
  %v753 = vrot.slane %v717, %v752
  %v754 = vadd.f32 %v748, %v753
  %v755 = vadd.f32 %v749, %v753
  %v756 = vld [vmem:[%s4 + $0x40] sm:$0xf]
  %v757 = vld [vmem:[%s4 + $0x44] sm:$0xf]
  %v758 = vld [vmem:[%s4 + $0x48] sm:$0xf]
  %v759 = vld [vmem:[%s4 + $0x4c] sm:$0xf]
  %v760 = vpack.c.bf16 %v755, %v754
  %v761 = vld [vmem:[%s3 + $0x6] sm:$0x1]
  %v762 = vlaneseq
  %v763 = vshrl.u32 %v762, 7
  %v764 = vsub.s32 0, %v763
  %v765 = vrot.slane %v761, %v764
  %v770 = vunpack.c.l.b16 %v756
  %v771 = vunpack.c.l.b16 %v757
  %v772 = vunpack.c.l.b16 %v758
  %v773 = vunpack.c.l.b16 %v759
  %v774 = vpack.c.b16 %v771, %v770
  %v775 = vpack.c.b16 %v773, %v772
  %v779 = vsel %vm193, %v760, 0
  %781 = vmatprep.subr.bf16.mxu0 0
  %782 = vmatpush1.bf16.msra.mxu0 %v774
  %783 = vmatprep.subr.bf16.mxu0 0
  %784 = vmatpush1.bf16.msra.mxu0 %v775
  %785 = vmatprep.subr.bf16.mxu0 0
  %786 = vmatpush1.bf16.msra.mxu0 0
  %787 = vmatprep.subr.bf16.mxu0 0
  %788 = vmatpush1.bf16.msra.mxu0 0
  %789 = vmatprep.subr.bf16.mxu0 0
  %790 = vmatpush1.bf16.msra.mxu0 0
  %791 = vmatprep.subr.bf16.mxu0 0
  %792 = vmatpush1.bf16.msra.mxu0 0
  %793 = vmatprep.subr.bf16.mxu0 0
  %794 = vmatpush1.bf16.msra.mxu0 0
  %795 = vmatprep.subr.bf16.mxu0 0
  %796 = vmatpush1.bf16.msra.mxu0 0
  %797 = vmatprep.subr.bf16.mxu0 0
  %798 = vmatpush1.bf16.msra.mxu0 0
  %799 = vmatprep.subr.bf16.mxu0 0
  %800 = vmatpush1.bf16.msra.mxu0 0
  %801 = vmatprep.subr.bf16.mxu0 0
  %802 = vmatpush1.bf16.msra.mxu0 0
  %803 = vmatprep.subr.bf16.mxu0 0
  %804 = vmatpush1.bf16.msra.mxu0 0
  %805 = vmatprep.subr.bf16.mxu0 0
  %806 = vmatpush1.bf16.msra.mxu0 0
  %807 = vmatprep.subr.bf16.mxu0 0
  %808 = vmatpush1.bf16.msra.mxu0 0
  %809 = vmatprep.subr.bf16.mxu0 0
  %810 = vmatpush1.bf16.msra.mxu0 0
  %811 = vmatprep.subr.bf16.mxu0 0
  %812 = vmatpush1.bf16.msra.mxu0 0
  %813 = vmatprep.mubr.bf16.mxu0 0
  %814 = vmatmul.mubr.bf16.gmra.mrb[0].mxu0 %v779
  %v815 = vpop.f32.mrb[0].mxu0
  %v816 = vadd.f32 %v765, %v815
  %v817 = vpop.f32.mrb[0].mxu0
  %v818 = vpop.f32.mrb[0].mxu0
  %v819 = vadd.f32 %v765, %v818
  %v820 = vpop.f32.mrb[0].mxu0
  %821 = vdwg.mxu0
  %v822 = vmul.f32 %v816, 0.5
  %v823 = vmul.f32 %v819, 0.5
  %v824 = vmul.f32 %v816, 0.70710677
  %v825 = vmul.f32 %v819, 0.70710677
  %vm826 = vcmp.lt.f32.partialorder %v824, 0.0
  %vm827 = vcmp.lt.f32.partialorder %v825, 0.0
  %v828 = vsel %vm826, -1.0, 1.0
  %v829 = vsel %vm827, -1.0, 1.0
  %v830 = vand.u32 2147483647, %v824
  %v831 = vand.u32 2147483647, %v825
  %v832 = vmul.f32 %v830, 0.3275911
  %v833 = vmul.f32 %v831, 0.3275911
  %v834 = vadd.f32 %v832, 1.0
  %v835 = vadd.f32 %v833, 1.0
  %v836 = vrcp.pop %v834
  %v837 = vrcp.pop %v835
  %v838 = vmul.f32 %v836, 1.0614054
  %v839 = vmul.f32 %v837, 1.0614054
  %v840 = vadd.f32 %v838, -1.4531521
  %v841 = vadd.f32 %v839, -1.4531521
  %v842 = vmul.f32 %v840, %v836
  %v843 = vmul.f32 %v841, %v837
  %v844 = vadd.f32 %v842, 1.4214138
  %v845 = vadd.f32 %v843, 1.4214138
  %v846 = vmul.f32 %v844, %v836
  %v847 = vmul.f32 %v845, %v837
  %v848 = vadd.f32 %v846, -0.28449672
  %v849 = vadd.f32 %v847, -0.28449672
  %v850 = vmul.f32 %v848, %v836
  %v851 = vmul.f32 %v849, %v837
  %v852 = vadd.f32 %v850, 0.2548296
  %v853 = vadd.f32 %v851, 0.2548296
  %v854 = vmul.f32 %v852, %v836
  %v855 = vmul.f32 %v853, %v837
  %v856 = vsub.f32 0.0, %v830
  %v857 = vsub.f32 0.0, %v831
  %v858 = vmul.f32 %v856, %v830
  %v859 = vmul.f32 %v857, %v831
  %v860 = vmul.f32 %v858, 1.442695
  %v861 = vpow.pop %v860
  %v862 = vmul.f32 %v859, 1.442695
  %v863 = vpow.pop %v862
  %v864 = vmul.f32 %v854, %v861
  %v865 = vmul.f32 %v855, %v863
  %v866 = vsub.f32 1.0, %v864
  %v867 = vsub.f32 1.0, %v865
  %v868 = vmul.f32 %v828, %v866
  %v869 = vmul.f32 %v829, %v867
  %v870 = vadd.f32 %v868, 1.0
  %v871 = vadd.f32 %v869, 1.0
  %v872 = vmul.f32 %v822, %v870
  %v873 = vmul.f32 %v823, %v871
  %v874 = vld [vmem:[%s4 + $0x60] sm:$0xf]
  %v875 = vld [vmem:[%s4 + $0x64] sm:$0xf]
  %v876 = vld [vmem:[%s4 + $0x68] sm:$0xf]
  %v877 = vld [vmem:[%s4 + $0x6c] sm:$0xf]
  %v878 = vld [vmem:[%s4 + $0x70] sm:$0xf]
  %v879 = vld [vmem:[%s4 + $0x74] sm:$0xf]
  %v880 = vld [vmem:[%s4 + $0x78] sm:$0xf]
  %v881 = vld [vmem:[%s4 + $0x7c] sm:$0xf]
  %v882 = vpack.c.bf16 %v873, %v872
  %v883 = vld [vmem:[%s3 + $0x7] sm:$0x1]
  %v884 = vlaneseq
  %v885 = vshrl.u32 %v884, 7
  %v886 = vsub.s32 0, %v885
  %v887 = vrot.slane %v883, %v886
  %v896 = vunpack.c.l.b16 %v874
  %v897 = vunpack.c.l.b16 %v875
  %v898 = vunpack.c.l.b16 %v876
  %v899 = vunpack.c.l.b16 %v877
  %v900 = vunpack.c.l.b16 %v878
  %v901 = vunpack.c.l.b16 %v879
  %v902 = vunpack.c.l.b16 %v880
  %v903 = vunpack.c.l.b16 %v881
  %v904 = vpack.c.b16 %v897, %v896
  %v905 = vpack.c.b16 %v899, %v898
  %v906 = vpack.c.b16 %v901, %v900
  %v907 = vpack.c.b16 %v903, %v902
  %v913 = vsel %vm429, %v882, 0
  %915 = vmatprep.subr.bf16.mxu0 0
  %916 = vmatpush1.bf16.msra.mxu0 %v904
  %917 = vmatprep.subr.bf16.mxu0 0
  %918 = vmatpush1.bf16.msra.mxu0 %v905
  %919 = vmatprep.subr.bf16.mxu0 0
  %920 = vmatpush1.bf16.msra.mxu0 %v906
  %921 = vmatprep.subr.bf16.mxu0 0
  %922 = vmatpush1.bf16.msra.mxu0 %v907
  %923 = vmatprep.subr.bf16.mxu0 0
  %924 = vmatpush1.bf16.msra.mxu0 0
  %925 = vmatprep.subr.bf16.mxu0 0
  %926 = vmatpush1.bf16.msra.mxu0 0
  %927 = vmatprep.subr.bf16.mxu0 0
  %928 = vmatpush1.bf16.msra.mxu0 0
  %929 = vmatprep.subr.bf16.mxu0 0
  %930 = vmatpush1.bf16.msra.mxu0 0
  %931 = vmatprep.subr.bf16.mxu0 0
  %932 = vmatpush1.bf16.msra.mxu0 0
  %933 = vmatprep.subr.bf16.mxu0 0
  %934 = vmatpush1.bf16.msra.mxu0 0
  %935 = vmatprep.subr.bf16.mxu0 0
  %936 = vmatpush1.bf16.msra.mxu0 0
  %937 = vmatprep.subr.bf16.mxu0 0
  %938 = vmatpush1.bf16.msra.mxu0 0
  %939 = vmatprep.subr.bf16.mxu0 0
  %940 = vmatpush1.bf16.msra.mxu0 0
  %941 = vmatprep.subr.bf16.mxu0 0
  %942 = vmatpush1.bf16.msra.mxu0 0
  %943 = vmatprep.subr.bf16.mxu0 0
  %944 = vmatpush1.bf16.msra.mxu0 0
  %945 = vmatprep.subr.bf16.mxu0 0
  %946 = vmatpush1.bf16.msra.mxu0 0
  %947 = vmatprep.mubr.bf16.mxu0 0
  %948 = vmatmul.mubr.bf16.gmra.mrb[0].mxu0 %v913
  %v949 = vpop.f32.mrb[0].mxu0
  %v950 = vadd.f32 %v887, %v949
  %v951 = vpop.f32.mrb[0].mxu0
  %v952 = vpop.f32.mrb[0].mxu0
  %v953 = vadd.f32 %v887, %v952
  %v954 = vpop.f32.mrb[0].mxu0
  %955 = vdwg.mxu0
  %v956 = vadd.f32 %v754, %v950
  %v957 = vadd.f32 %v755, %v953
  %v958 = vld [vmem:[%s3 + $0x8] sm:$0x1]
  %v959 = vld [vmem:[%s3 + $0x9] sm:$0x1]
  %v960 = vsel %vm193, %v956, 0.0
  %961 = vadd.xlane.f32.xlu0 %v960
  %v962 = vpop.xlane.xlu0 %961
  %v963 = vsel %vm193, %v957, 0.0
  %964 = vadd.xlane.f32.xlu0 %v963
  %v965 = vpop.xlane.xlu0 %964
  %v966 = vmul.f32 %v962, %v200
  %v967 = vmul.f32 %v965, %v200
  %v968 = vsub.f32 %v956, %v966
  %v969 = vsub.f32 %v957, %v967
  %v970 = vmul.f32 %v968, %v968
  %v971 = vmul.f32 %v969, %v969
  %v972 = vsel %vm193, %v970, 0.0
  %973 = vadd.xlane.f32.xlu0 %v972
  %v974 = vpop.xlane.xlu0 %973
  %v975 = vsel %vm193, %v971, 0.0
  %976 = vadd.xlane.f32.xlu0 %v975
  %v977 = vpop.xlane.xlu0 %976
  %v978 = vmul.f32 %v974, %v200
  %v979 = vmul.f32 %v977, %v200
  %v980 = vadd.f32 %v978, 1e-12
  %v981 = vadd.f32 %v979, 1e-12
  %v982 = vrsqrt.pop %v980
  %v983 = vrsqrt.pop %v981
  %v984 = vmul.f32 %v968, %v982
  %v985 = vmul.f32 %v969, %v983
  %v986 = vlaneseq
  %v987 = vshrl.u32 %v986, 7
  %v988 = vsub.s32 0, %v987
  %v989 = vrot.slane %v958, %v988
  %v990 = vmul.f32 %v984, %v989
  %v991 = vmul.f32 %v985, %v989
  %v992 = vlaneseq
  %v993 = vshrl.u32 %v992, 7
  %v994 = vsub.s32 0, %v993
  %v995 = vrot.slane %v959, %v994
  %v996 = vadd.f32 %v990, %v995
  %v997 = vadd.f32 %v991, %v995
  %v998 = vld [vmem:[%s4 + $0x10] sm:$0xf]
  %v999 = vld [vmem:[%s4 + $0x14] sm:$0xf]
  %v1000 = vld [vmem:[%s4 + $0x18] sm:$0xf]
  %v1001 = vld [vmem:[%s4 + $0x1c] sm:$0xf]
  %v1002 = vpack.c.bf16 %v997, %v996
  %v1003 = vld [vmem:[%s3 + $0xa] sm:$0x1]
  %v1004 = vlaneseq
  %v1005 = vshrl.u32 %v1004, 7
  %v1006 = vsub.s32 0, %v1005
  %v1007 = vrot.slane %v1003, %v1006
  %v1012 = vunpack.c.l.b16 %v998
  %v1013 = vunpack.c.l.b16 %v999
  %v1014 = vunpack.c.l.b16 %v1000
  %v1015 = vunpack.c.l.b16 %v1001
  %v1016 = vpack.c.b16 %v1013, %v1012
  %v1017 = vpack.c.b16 %v1015, %v1014
  %v1021 = vsel %vm193, %v1002, 0
  %1023 = vmatprep.subr.bf16.mxu0 0
  %1024 = vmatpush1.bf16.msra.mxu0 %v1016
  %1025 = vmatprep.subr.bf16.mxu0 0
  %1026 = vmatpush1.bf16.msra.mxu0 %v1017
  %1027 = vmatprep.subr.bf16.mxu0 0
  %1028 = vmatpush1.bf16.msra.mxu0 0
  %1029 = vmatprep.subr.bf16.mxu0 0
  %1030 = vmatpush1.bf16.msra.mxu0 0
  %1031 = vmatprep.subr.bf16.mxu0 0
  %1032 = vmatpush1.bf16.msra.mxu0 0
  %1033 = vmatprep.subr.bf16.mxu0 0
  %1034 = vmatpush1.bf16.msra.mxu0 0
  %1035 = vmatprep.subr.bf16.mxu0 0
  %1036 = vmatpush1.bf16.msra.mxu0 0
  %1037 = vmatprep.subr.bf16.mxu0 0
  %1038 = vmatpush1.bf16.msra.mxu0 0
  %1039 = vmatprep.subr.bf16.mxu0 0
  %1040 = vmatpush1.bf16.msra.mxu0 0
  %1041 = vmatprep.subr.bf16.mxu0 0
  %1042 = vmatpush1.bf16.msra.mxu0 0
  %1043 = vmatprep.subr.bf16.mxu0 0
  %1044 = vmatpush1.bf16.msra.mxu0 0
  %1045 = vmatprep.subr.bf16.mxu0 0
  %1046 = vmatpush1.bf16.msra.mxu0 0
  %1047 = vmatprep.subr.bf16.mxu0 0
  %1048 = vmatpush1.bf16.msra.mxu0 0
  %1049 = vmatprep.subr.bf16.mxu0 0
  %1050 = vmatpush1.bf16.msra.mxu0 0
  %1051 = vmatprep.subr.bf16.mxu0 0
  %1052 = vmatpush1.bf16.msra.mxu0 0
  %1053 = vmatprep.subr.bf16.mxu0 0
  %1054 = vmatpush1.bf16.msra.mxu0 0
  %1055 = vmatprep.mubr.bf16.mxu0 0
  %1056 = vmatmul.mubr.bf16.gmra.mrb[0].mxu0 %v1021
  %v1057 = vpop.f32.mrb[0].mxu0
  %v1058 = vadd.f32 %v1007, %v1057
  %v1059 = vpop.f32.mrb[0].mxu0
  %v1060 = vpop.f32.mrb[0].mxu0
  %v1061 = vadd.f32 %v1007, %v1060
  %v1062 = vpop.f32.mrb[0].mxu0
  %1063 = vdwg.mxu0
  %v1064 = vpack.c.bf16 %v1061, %v1058
  %1065 = vst.msk [vmem:[#allocation2] sm:$0xff] %vm300, %v1064
  %1067 = vrot.lane.b32.xlu0 %v1064, 104
  %v1068 = vpop.permute.xlu0 %1067
  %1070 = vst.msk [vmem:[#allocation2 + $0x8] sm:$0xff] %vm300, %v1068
  %1071 = vrot.lane.b32.xlu0 %v1064, 80
  %v1072 = vpop.permute.xlu0 %1071
  %1074 = vst.msk [vmem:[#allocation2 + $0x10] sm:$0xff] %vm300, %v1072
  %1075 = vrot.lane.b32.xlu0 %v1064, 56
  %v1076 = vpop.permute.xlu0 %1075
  %1078 = vst.msk [vmem:[#allocation2 + $0x18] sm:$0xff] %vm300, %v1076
  %v1079 = vld [vmem:[#allocation2] sm:$0xff]
  %v1080 = vld [vmem:[#allocation2 + $0x8] sm:$0xff]
  %v1081 = vld [vmem:[#allocation2 + $0x10] sm:$0xff]
  %v1082 = vld [vmem:[#allocation2 + $0x18] sm:$0xff]
  %v1083 = vld [vmem:[%s2] sm:$0xff]
  %v1084 = vld [vmem:[%s2 + $0x8] sm:$0xff]
  %v1085 = vld [vmem:[%s2 + $0x10] sm:$0xff]
  %v1086 = vld [vmem:[%s2 + $0x18] sm:$0xff]
  %v1087 = vld [vmem:[%s2 + $0x20] sm:$0xff]
  %v1088 = vld [vmem:[%s2 + $0x28] sm:$0xff]
  %v1089 = vld [vmem:[%s2 + $0x30] sm:$0xff]
  %v1090 = vld [vmem:[%s2 + $0x38] sm:$0xff]
  %1095 = vrot.lane.b32.xlu0 %v1079, 120
  %v1096 = vpop.permute.xlu0 %1095
  %1097 = vrot.lane.b32.xlu0 %v1080, 120
  %v1098 = vpop.permute.xlu0 %1097
  %1099 = vrot.lane.b32.xlu0 %v1081, 120
  %v1100 = vpop.permute.xlu0 %1099
  %1101 = vrot.lane.b32.xlu0 %v1082, 120
  %v1102 = vpop.permute.xlu0 %1101
  %v1104 = vsel %vm339, %v1079, 0
  %v1107 = vsel %vm339, %v1080, 0
  %v1110 = vsel %vm339, %v1081, 0
  %v1113 = vsel %vm339, %v1082, 0
  %v1116 = vsel %vm339, %v1096, 0
  %v1119 = vsel %vm339, %v1098, 0
  %v1122 = vsel %vm339, %v1100, 0
  %v1125 = vsel %vm339, %v1102, 0
  %1127 = vmatprep.subr.bf16.mxu0 0
  %1128 = vmatpush1.bf16.xpose.msra.mxu0 %v1116
  %1129 = vmatprep.subr.bf16.mxu0 0
  %1130 = vmatpush1.bf16.xpose.msra.mxu0 %v1119
  %1131 = vmatprep.subr.bf16.mxu0 0
  %1132 = vmatpush1.bf16.xpose.msra.mxu0 %v1122
  %1133 = vmatprep.subr.bf16.mxu0 0
  %1134 = vmatpush1.bf16.xpose.msra.mxu0 %v1125
  %1135 = vmatprep.subr.bf16.mxu0 0
  %1136 = vmatpush1.bf16.xpose.msra.mxu0 0
  %1137 = vmatprep.subr.bf16.mxu0 0
  %1138 = vmatpush1.bf16.xpose.msra.mxu0 0
  %1139 = vmatprep.subr.bf16.mxu0 0
  %1140 = vmatpush1.bf16.xpose.msra.mxu0 0
  %1141 = vmatprep.subr.bf16.mxu0 0
  %1142 = vmatpush1.bf16.xpose.msra.mxu0 0
  %1143 = vmatprep.subr.bf16.mxu0 0
  %1144 = vmatpush1.bf16.xpose.msra.mxu0 0
  %1145 = vmatprep.subr.bf16.mxu0 0
  %1146 = vmatpush1.bf16.xpose.msra.mxu0 0
  %1147 = vmatprep.subr.bf16.mxu0 0
  %1148 = vmatpush1.bf16.xpose.msra.mxu0 0
  %1149 = vmatprep.subr.bf16.mxu0 0
  %1150 = vmatpush1.bf16.xpose.msra.mxu0 0
  %1151 = vmatprep.subr.bf16.mxu0 0
  %1152 = vmatpush1.bf16.xpose.msra.mxu0 0
  %1153 = vmatprep.subr.bf16.mxu0 0
  %1154 = vmatpush1.bf16.xpose.msra.mxu0 0
  %1155 = vmatprep.subr.bf16.mxu0 0
  %1156 = vmatpush1.bf16.xpose.msra.mxu0 0
  %1157 = vmatprep.subr.bf16.mxu0 0
  %1158 = vmatpush1.bf16.xpose.msra.mxu0 0
  %1159 = vmatprep.mubr.bf16.mxu0 0
  %1160 = vmatmul.mubr.bf16.gmra.mrb[0].mxu0 %v1104
  %v1161 = vpop.f32.mrb[0].mxu0
  %v1162 = vadd.f32 %v1083, %v1161
  %v1163 = vpop.f32.mrb[0].mxu0
  %v1164 = vpop.f32.mrb[0].mxu0
  %v1165 = vadd.f32 %v1084, %v1164
  %v1166 = vpop.f32.mrb[0].mxu0
  %1167 = vmatprep.mubr.bf16.mxu0 0
  %1168 = vmatmul.mubr.bf16.gmra.mrb[0].mxu0 %v1107
  %v1169 = vpop.f32.mrb[0].mxu0
  %v1170 = vadd.f32 %v1085, %v1169
  %v1171 = vpop.f32.mrb[0].mxu0
  %v1172 = vpop.f32.mrb[0].mxu0
  %v1173 = vadd.f32 %v1086, %v1172
  %v1174 = vpop.f32.mrb[0].mxu0
  %1175 = vmatprep.mubr.bf16.mxu0 0
  %1176 = vmatmul.mubr.bf16.gmra.mrb[0].mxu0 %v1110
  %v1177 = vpop.f32.mrb[0].mxu0
  %v1178 = vadd.f32 %v1087, %v1177
  %v1179 = vpop.f32.mrb[0].mxu0
  %v1180 = vpop.f32.mrb[0].mxu0
  %v1181 = vadd.f32 %v1088, %v1180
  %v1182 = vpop.f32.mrb[0].mxu0
  %1183 = vmatprep.mubr.bf16.mxu0 0
  %1184 = vmatmul.mubr.bf16.gmra.mrb[0].mxu0 %v1113
  %v1185 = vpop.f32.mrb[0].mxu0
  %v1186 = vadd.f32 %v1089, %v1185
  %v1187 = vpop.f32.mrb[0].mxu0
  %v1188 = vpop.f32.mrb[0].mxu0
  %v1189 = vadd.f32 %v1090, %v1188
  %v1190 = vpop.f32.mrb[0].mxu0
  %1191 = vdwg.mxu0
  %v1192 = vsel %vm429, %v1162, -inf
  %1193 = vmax.xlane.f32.xlu0 %v1192
  %v1194 = vpop.xlane.xlu0 %1193
  %v1195 = vsel %vm429, %v1165, -inf
  %1196 = vmax.xlane.f32.xlu0 %v1195
  %v1197 = vpop.xlane.xlu0 %1196
  %v1198 = vsel %vm429, %v1170, -inf
  %1199 = vmax.xlane.f32.xlu0 %v1198
  %v1200 = vpop.xlane.xlu0 %1199
  %v1201 = vsel %vm429, %v1173, -inf
  %1202 = vmax.xlane.f32.xlu0 %v1201
  %v1203 = vpop.xlane.xlu0 %1202
  %v1204 = vsel %vm429, %v1178, -inf
  %1205 = vmax.xlane.f32.xlu0 %v1204
  %v1206 = vpop.xlane.xlu0 %1205
  %v1207 = vsel %vm429, %v1181, -inf
  %1208 = vmax.xlane.f32.xlu0 %v1207
  %v1209 = vpop.xlane.xlu0 %1208
  %v1210 = vsel %vm429, %v1186, -inf
  %1211 = vmax.xlane.f32.xlu0 %v1210
  %v1212 = vpop.xlane.xlu0 %1211
  %v1213 = vsel %vm429, %v1189, -inf
  %1214 = vmax.xlane.f32.xlu0 %v1213
  %v1215 = vpop.xlane.xlu0 %1214
  %v1216 = vsub.f32 %v1162, %v1194
  %v1217 = vsub.f32 %v1165, %v1197
  %v1218 = vsub.f32 %v1170, %v1200
  %v1219 = vsub.f32 %v1173, %v1203
  %v1220 = vsub.f32 %v1178, %v1206
  %v1221 = vsub.f32 %v1181, %v1209
  %v1222 = vsub.f32 %v1186, %v1212
  %v1223 = vsub.f32 %v1189, %v1215
  %v1224 = vmul.f32 %v1216, 1.442695
  %v1225 = vpow.pop %v1224
  %v1226 = vmul.f32 %v1217, 1.442695
  %v1227 = vpow.pop %v1226
  %v1228 = vmul.f32 %v1218, 1.442695
  %v1229 = vpow.pop %v1228
  %v1230 = vmul.f32 %v1219, 1.442695
  %v1231 = vpow.pop %v1230
  %v1232 = vmul.f32 %v1220, 1.442695
  %v1233 = vpow.pop %v1232
  %v1234 = vmul.f32 %v1221, 1.442695
  %v1235 = vpow.pop %v1234
  %v1236 = vmul.f32 %v1222, 1.442695
  %v1237 = vpow.pop %v1236
  %v1238 = vmul.f32 %v1223, 1.442695
  %v1239 = vpow.pop %v1238
  %v1240 = vsel %vm429, %v1225, 0.0
  %1241 = vadd.xlane.f32.xlu0 %v1240
  %v1242 = vpop.xlane.xlu0 %1241
  %v1243 = vsel %vm429, %v1227, 0.0
  %1244 = vadd.xlane.f32.xlu0 %v1243
  %v1245 = vpop.xlane.xlu0 %1244
  %v1246 = vsel %vm429, %v1229, 0.0
  %1247 = vadd.xlane.f32.xlu0 %v1246
  %v1248 = vpop.xlane.xlu0 %1247
  %v1249 = vsel %vm429, %v1231, 0.0
  %1250 = vadd.xlane.f32.xlu0 %v1249
  %v1251 = vpop.xlane.xlu0 %1250
  %v1252 = vsel %vm429, %v1233, 0.0
  %1253 = vadd.xlane.f32.xlu0 %v1252
  %v1254 = vpop.xlane.xlu0 %1253
  %v1255 = vsel %vm429, %v1235, 0.0
  %1256 = vadd.xlane.f32.xlu0 %v1255
  %v1257 = vpop.xlane.xlu0 %1256
  %v1258 = vsel %vm429, %v1237, 0.0
  %1259 = vadd.xlane.f32.xlu0 %v1258
  %v1260 = vpop.xlane.xlu0 %1259
  %v1261 = vsel %vm429, %v1239, 0.0
  %1262 = vadd.xlane.f32.xlu0 %v1261
  %v1263 = vpop.xlane.xlu0 %1262
  %v1264 = vrcp.pop %v1242
  %v1265 = vrcp.pop %v1245
  %v1266 = vrcp.pop %v1248
  %v1267 = vrcp.pop %v1251
  %v1268 = vrcp.pop %v1254
  %v1269 = vrcp.pop %v1257
  %v1270 = vrcp.pop %v1260
  %v1271 = vrcp.pop %v1263
  %v1272 = vmul.f32 %v1225, %v1264
  %v1273 = vmul.f32 %v1227, %v1265
  %v1274 = vmul.f32 %v1229, %v1266
  %v1275 = vmul.f32 %v1231, %v1267
  %v1276 = vmul.f32 %v1233, %v1268
  %v1277 = vmul.f32 %v1235, %v1269
  %v1278 = vmul.f32 %v1237, %v1270
  %v1279 = vmul.f32 %v1239, %v1271
  %v1280 = vpack.c.bf16 %v1273, %v1272
  %v1281 = vpack.c.bf16 %v1275, %v1274
  %v1282 = vpack.c.bf16 %v1277, %v1276
  %v1283 = vpack.c.bf16 %v1279, %v1278
  %1284 = vrot.lane.b32.xlu0 %v1079, 112
  %v1285 = vpop.permute.xlu0 %1284
  %1286 = vrot.lane.b32.xlu0 %v1080, 112
  %v1287 = vpop.permute.xlu0 %1286
  %1288 = vrot.lane.b32.xlu0 %v1081, 112
  %v1289 = vpop.permute.xlu0 %1288
  %1290 = vrot.lane.b32.xlu0 %v1082, 112
  %v1291 = vpop.permute.xlu0 %1290
  %v1297 = vsel %vm429, %v1280, 0
  %v1300 = vsel %vm429, %v1281, 0
  %v1303 = vsel %vm429, %v1282, 0
  %v1306 = vsel %vm429, %v1283, 0
  %1308 = vmatprep.subr.bf16.mxu0 0
  %1309 = vmatpush1.bf16.msra.mxu0 %v1285
  %1310 = vmatprep.subr.bf16.mxu0 0
  %1311 = vmatpush1.bf16.msra.mxu0 %v1287
  %1312 = vmatprep.subr.bf16.mxu0 0
  %1313 = vmatpush1.bf16.msra.mxu0 %v1289
  %1314 = vmatprep.subr.bf16.mxu0 0
  %1315 = vmatpush1.bf16.msra.mxu0 %v1291
  %1316 = vmatprep.subr.bf16.mxu0 0
  %1317 = vmatpush1.bf16.msra.mxu0 0
  %1318 = vmatprep.subr.bf16.mxu0 0
  %1319 = vmatpush1.bf16.msra.mxu0 0
  %1320 = vmatprep.subr.bf16.mxu0 0
  %1321 = vmatpush1.bf16.msra.mxu0 0
  %1322 = vmatprep.subr.bf16.mxu0 0
  %1323 = vmatpush1.bf16.msra.mxu0 0
  %1324 = vmatprep.subr.bf16.mxu0 0
  %1325 = vmatpush1.bf16.msra.mxu0 0
  %1326 = vmatprep.subr.bf16.mxu0 0
  %1327 = vmatpush1.bf16.msra.mxu0 0
  %1328 = vmatprep.subr.bf16.mxu0 0
  %1329 = vmatpush1.bf16.msra.mxu0 0
  %1330 = vmatprep.subr.bf16.mxu0 0
  %1331 = vmatpush1.bf16.msra.mxu0 0
  %1332 = vmatprep.subr.bf16.mxu0 0
  %1333 = vmatpush1.bf16.msra.mxu0 0
  %1334 = vmatprep.subr.bf16.mxu0 0
  %1335 = vmatpush1.bf16.msra.mxu0 0
  %1336 = vmatprep.subr.bf16.mxu0 0
  %1337 = vmatpush1.bf16.msra.mxu0 0
  %1338 = vmatprep.subr.bf16.mxu0 0
  %1339 = vmatpush1.bf16.msra.mxu0 0
  %1340 = vmatprep.mubr.bf16.mxu0 0
  %1341 = vmatmul.mubr.bf16.gmra.mrb[0].mxu0 %v1297
  %v1342 = vpop.f32.mrb[0].mxu0
  %v1343 = vadd.f32 0.0, %v1342
  %v1344 = vpop.f32.mrb[0].mxu0
  %v1345 = vpop.f32.mrb[0].mxu0
  %v1346 = vadd.f32 0.0, %v1345
  %v1347 = vpop.f32.mrb[0].mxu0
  %1348 = vmatprep.mubr.bf16.mxu0 0
  %1349 = vmatmul.mubr.bf16.gmra.mrb[0].mxu0 %v1300
  %v1350 = vpop.f32.mrb[0].mxu0
  %v1351 = vadd.f32 0.0, %v1350
  %v1352 = vpop.f32.mrb[0].mxu0
  %v1353 = vpop.f32.mrb[0].mxu0
  %v1354 = vadd.f32 0.0, %v1353
  %v1355 = vpop.f32.mrb[0].mxu0
  %1356 = vmatprep.mubr.bf16.mxu0 0
  %1357 = vmatmul.mubr.bf16.gmra.mrb[0].mxu0 %v1303
  %v1358 = vpop.f32.mrb[0].mxu0
  %v1359 = vadd.f32 0.0, %v1358
  %v1360 = vpop.f32.mrb[0].mxu0
  %v1361 = vpop.f32.mrb[0].mxu0
  %v1362 = vadd.f32 0.0, %v1361
  %v1363 = vpop.f32.mrb[0].mxu0
  %1364 = vmatprep.mubr.bf16.mxu0 0
  %1365 = vmatmul.mubr.bf16.gmra.mrb[0].mxu0 %v1306
  %v1366 = vpop.f32.mrb[0].mxu0
  %v1367 = vadd.f32 0.0, %v1366
  %v1368 = vpop.f32.mrb[0].mxu0
  %v1369 = vpop.f32.mrb[0].mxu0
  %v1370 = vadd.f32 0.0, %v1369
  %v1371 = vpop.f32.mrb[0].mxu0
  %1372 = vdwg.mxu0
  %1373 = vst.msk [vmem:[#allocation3] sm:$0xff] %vm339, %v1343
  %1374 = vst.msk [vmem:[#allocation3 + $0x8] sm:$0xff] %vm339, %v1346
  %1377 = vrot.lane.b32.xlu0 %v1351, 8
  %v1378 = vpop.permute.xlu0 %1377
  %1379 = vrot.lane.b32.xlu0 %v1354, 8
  %v1380 = vpop.permute.xlu0 %1379
  %1383 = vst.msk [vmem:[#allocation3] sm:$0xff] %vm621, %v1378
  %1384 = vst.msk [vmem:[#allocation3 + $0x8] sm:$0xff] %vm621, %v1380
  %1387 = vrot.lane.b32.xlu0 %v1359, 16
  %v1388 = vpop.permute.xlu0 %1387
  %1389 = vrot.lane.b32.xlu0 %v1362, 16
  %v1390 = vpop.permute.xlu0 %1389
  %1393 = vst.msk [vmem:[#allocation3] sm:$0xff] %vm632, %v1388
  %1394 = vst.msk [vmem:[#allocation3 + $0x8] sm:$0xff] %vm632, %v1390
  %1397 = vrot.lane.b32.xlu0 %v1367, 24
  %v1398 = vpop.permute.xlu0 %1397
  %1399 = vrot.lane.b32.xlu0 %v1370, 24
  %v1400 = vpop.permute.xlu0 %1399
  %1403 = vst.msk [vmem:[#allocation3] sm:$0xff] %vm643, %v1398
  %1404 = vst.msk [vmem:[#allocation3 + $0x8] sm:$0xff] %vm643, %v1400
  %v1405 = vld [vmem:[%s4 + $0x30] sm:$0xf]
  %v1406 = vld [vmem:[%s4 + $0x34] sm:$0xf]
  %v1407 = vld [vmem:[%s4 + $0x38] sm:$0xf]
  %v1408 = vld [vmem:[%s4 + $0x3c] sm:$0xf]
  %v1409 = vld [vmem:[#allocation3] sm:$0xff]
  %v1410 = vld [vmem:[#allocation3 + $0x8] sm:$0xff]
  %v1411 = vpack.c.bf16 %v1410, %v1409
  %v1412 = vld [vmem:[%s3 + $0xb] sm:$0x1]
  %v1413 = vlaneseq
  %v1414 = vshrl.u32 %v1413, 7
  %v1415 = vsub.s32 0, %v1414
  %v1416 = vrot.slane %v1412, %v1415
  %v1421 = vunpack.c.l.b16 %v1405
  %v1422 = vunpack.c.l.b16 %v1406
  %v1423 = vunpack.c.l.b16 %v1407
  %v1424 = vunpack.c.l.b16 %v1408
  %v1425 = vpack.c.b16 %v1422, %v1421
  %v1426 = vpack.c.b16 %v1424, %v1423
  %v1430 = vsel %vm193, %v1411, 0
  %1432 = vmatprep.subr.bf16.mxu0 0
  %1433 = vmatpush1.bf16.msra.mxu0 %v1425
  %1434 = vmatprep.subr.bf16.mxu0 0
  %1435 = vmatpush1.bf16.msra.mxu0 %v1426
  %1436 = vmatprep.subr.bf16.mxu0 0
  %1437 = vmatpush1.bf16.msra.mxu0 0
  %1438 = vmatprep.subr.bf16.mxu0 0
  %1439 = vmatpush1.bf16.msra.mxu0 0
  %1440 = vmatprep.subr.bf16.mxu0 0
  %1441 = vmatpush1.bf16.msra.mxu0 0
  %1442 = vmatprep.subr.bf16.mxu0 0
  %1443 = vmatpush1.bf16.msra.mxu0 0
  %1444 = vmatprep.subr.bf16.mxu0 0
  %1445 = vmatpush1.bf16.msra.mxu0 0
  %1446 = vmatprep.subr.bf16.mxu0 0
  %1447 = vmatpush1.bf16.msra.mxu0 0
  %1448 = vmatprep.subr.bf16.mxu0 0
  %1449 = vmatpush1.bf16.msra.mxu0 0
  %1450 = vmatprep.subr.bf16.mxu0 0
  %1451 = vmatpush1.bf16.msra.mxu0 0
  %1452 = vmatprep.subr.bf16.mxu0 0
  %1453 = vmatpush1.bf16.msra.mxu0 0
  %1454 = vmatprep.subr.bf16.mxu0 0
  %1455 = vmatpush1.bf16.msra.mxu0 0
  %1456 = vmatprep.subr.bf16.mxu0 0
  %1457 = vmatpush1.bf16.msra.mxu0 0
  %1458 = vmatprep.subr.bf16.mxu0 0
  %1459 = vmatpush1.bf16.msra.mxu0 0
  %1460 = vmatprep.subr.bf16.mxu0 0
  %1461 = vmatpush1.bf16.msra.mxu0 0
  %1462 = vmatprep.subr.bf16.mxu0 0
  %1463 = vmatpush1.bf16.msra.mxu0 0
  %1464 = vmatprep.mubr.bf16.mxu0 0
  %1465 = vmatmul.mubr.bf16.gmra.mrb[0].mxu0 %v1430
  %v1466 = vpop.f32.mrb[0].mxu0
  %v1467 = vadd.f32 %v1416, %v1466
  %v1468 = vpop.f32.mrb[0].mxu0
  %v1469 = vpop.f32.mrb[0].mxu0
  %v1470 = vadd.f32 %v1416, %v1469
  %v1471 = vpop.f32.mrb[0].mxu0
  %1472 = vdwg.mxu0
  %v1473 = vadd.f32 %v996, %v1467
  %v1474 = vadd.f32 %v997, %v1470
  %v1475 = vld [vmem:[%s3 + $0xc] sm:$0x1]
  %v1476 = vld [vmem:[%s3 + $0xd] sm:$0x1]
  %v1477 = vsel %vm193, %v1473, 0.0
  %1478 = vadd.xlane.f32.xlu0 %v1477
  %v1479 = vpop.xlane.xlu0 %1478
  %v1480 = vsel %vm193, %v1474, 0.0
  %1481 = vadd.xlane.f32.xlu0 %v1480
  %v1482 = vpop.xlane.xlu0 %1481
  %v1483 = vmul.f32 %v1479, %v200
  %v1484 = vmul.f32 %v1482, %v200
  %v1485 = vsub.f32 %v1473, %v1483
  %v1486 = vsub.f32 %v1474, %v1484
  %v1487 = vmul.f32 %v1485, %v1485
  %v1488 = vmul.f32 %v1486, %v1486
  %v1489 = vsel %vm193, %v1487, 0.0
  %1490 = vadd.xlane.f32.xlu0 %v1489
  %v1491 = vpop.xlane.xlu0 %1490
  %v1492 = vsel %vm193, %v1488, 0.0
  %1493 = vadd.xlane.f32.xlu0 %v1492
  %v1494 = vpop.xlane.xlu0 %1493
  %v1495 = vmul.f32 %v1491, %v200
  %v1496 = vmul.f32 %v1494, %v200
  %v1497 = vadd.f32 %v1495, 1e-12
  %v1498 = vadd.f32 %v1496, 1e-12
  %v1499 = vrsqrt.pop %v1497
  %v1500 = vrsqrt.pop %v1498
  %v1501 = vmul.f32 %v1485, %v1499
  %v1502 = vmul.f32 %v1486, %v1500
  %v1503 = vlaneseq
  %v1504 = vshrl.u32 %v1503, 7
  %v1505 = vsub.s32 0, %v1504
  %v1506 = vrot.slane %v1475, %v1505
  %v1507 = vmul.f32 %v1501, %v1506
  %v1508 = vmul.f32 %v1502, %v1506
  %v1509 = vlaneseq
  %v1510 = vshrl.u32 %v1509, 7
  %v1511 = vsub.s32 0, %v1510
  %v1512 = vrot.slane %v1476, %v1511
  %v1513 = vadd.f32 %v1507, %v1512
  %v1514 = vadd.f32 %v1508, %v1512
  %v1515 = vld [vmem:[%s4 + $0x50] sm:$0xf]
  %v1516 = vld [vmem:[%s4 + $0x54] sm:$0xf]
  %v1517 = vld [vmem:[%s4 + $0x58] sm:$0xf]
  %v1518 = vld [vmem:[%s4 + $0x5c] sm:$0xf]
  %v1519 = vpack.c.bf16 %v1514, %v1513
  %v1520 = vld [vmem:[%s3 + $0xe] sm:$0x1]
  %v1521 = vlaneseq
  %v1522 = vshrl.u32 %v1521, 7
  %v1523 = vsub.s32 0, %v1522
  %v1524 = vrot.slane %v1520, %v1523
  %v1529 = vunpack.c.l.b16 %v1515
  %v1530 = vunpack.c.l.b16 %v1516
  %v1531 = vunpack.c.l.b16 %v1517
  %v1532 = vunpack.c.l.b16 %v1518
  %v1533 = vpack.c.b16 %v1530, %v1529
  %v1534 = vpack.c.b16 %v1532, %v1531
  %v1538 = vsel %vm193, %v1519, 0
  %1540 = vmatprep.subr.bf16.mxu0 0
  %1541 = vmatpush1.bf16.msra.mxu0 %v1533
  %1542 = vmatprep.subr.bf16.mxu0 0
  %1543 = vmatpush1.bf16.msra.mxu0 %v1534
  %1544 = vmatprep.subr.bf16.mxu0 0
  %1545 = vmatpush1.bf16.msra.mxu0 0
  %1546 = vmatprep.subr.bf16.mxu0 0
  %1547 = vmatpush1.bf16.msra.mxu0 0
  %1548 = vmatprep.subr.bf16.mxu0 0
  %1549 = vmatpush1.bf16.msra.mxu0 0
  %1550 = vmatprep.subr.bf16.mxu0 0
  %1551 = vmatpush1.bf16.msra.mxu0 0
  %1552 = vmatprep.subr.bf16.mxu0 0
  %1553 = vmatpush1.bf16.msra.mxu0 0
  %1554 = vmatprep.subr.bf16.mxu0 0
  %1555 = vmatpush1.bf16.msra.mxu0 0
  %1556 = vmatprep.subr.bf16.mxu0 0
  %1557 = vmatpush1.bf16.msra.mxu0 0
  %1558 = vmatprep.subr.bf16.mxu0 0
  %1559 = vmatpush1.bf16.msra.mxu0 0
  %1560 = vmatprep.subr.bf16.mxu0 0
  %1561 = vmatpush1.bf16.msra.mxu0 0
  %1562 = vmatprep.subr.bf16.mxu0 0
  %1563 = vmatpush1.bf16.msra.mxu0 0
  %1564 = vmatprep.subr.bf16.mxu0 0
  %1565 = vmatpush1.bf16.msra.mxu0 0
  %1566 = vmatprep.subr.bf16.mxu0 0
  %1567 = vmatpush1.bf16.msra.mxu0 0
  %1568 = vmatprep.subr.bf16.mxu0 0
  %1569 = vmatpush1.bf16.msra.mxu0 0
  %1570 = vmatprep.subr.bf16.mxu0 0
  %1571 = vmatpush1.bf16.msra.mxu0 0
  %1572 = vmatprep.mubr.bf16.mxu0 0
  %1573 = vmatmul.mubr.bf16.gmra.mrb[0].mxu0 %v1538
  %v1574 = vpop.f32.mrb[0].mxu0
  %v1575 = vadd.f32 %v1524, %v1574
  %v1576 = vpop.f32.mrb[0].mxu0
  %v1577 = vpop.f32.mrb[0].mxu0
  %v1578 = vadd.f32 %v1524, %v1577
  %v1579 = vpop.f32.mrb[0].mxu0
  %1580 = vdwg.mxu0
  %v1581 = vmul.f32 %v1575, 0.5
  %v1582 = vmul.f32 %v1578, 0.5
  %v1583 = vmul.f32 %v1575, 0.70710677
  %v1584 = vmul.f32 %v1578, 0.70710677
  %vm1585 = vcmp.lt.f32.partialorder %v1583, 0.0
  %vm1586 = vcmp.lt.f32.partialorder %v1584, 0.0
  %v1587 = vsel %vm1585, -1.0, 1.0
  %v1588 = vsel %vm1586, -1.0, 1.0
  %v1589 = vand.u32 2147483647, %v1583
  %v1590 = vand.u32 2147483647, %v1584
  %v1591 = vmul.f32 %v1589, 0.3275911
  %v1592 = vmul.f32 %v1590, 0.3275911
  %v1593 = vadd.f32 %v1591, 1.0
  %v1594 = vadd.f32 %v1592, 1.0
  %v1595 = vrcp.pop %v1593
  %v1596 = vrcp.pop %v1594
  %v1597 = vmul.f32 %v1595, 1.0614054
  %v1598 = vmul.f32 %v1596, 1.0614054
  %v1599 = vadd.f32 %v1597, -1.4531521
  %v1600 = vadd.f32 %v1598, -1.4531521
  %v1601 = vmul.f32 %v1599, %v1595
  %v1602 = vmul.f32 %v1600, %v1596
  %v1603 = vadd.f32 %v1601, 1.4214138
  %v1604 = vadd.f32 %v1602, 1.4214138
  %v1605 = vmul.f32 %v1603, %v1595
  %v1606 = vmul.f32 %v1604, %v1596
  %v1607 = vadd.f32 %v1605, -0.28449672
  %v1608 = vadd.f32 %v1606, -0.28449672
  %v1609 = vmul.f32 %v1607, %v1595
  %v1610 = vmul.f32 %v1608, %v1596
  %v1611 = vadd.f32 %v1609, 0.2548296
  %v1612 = vadd.f32 %v1610, 0.2548296
  %v1613 = vmul.f32 %v1611, %v1595
  %v1614 = vmul.f32 %v1612, %v1596
  %v1615 = vsub.f32 0.0, %v1589
  %v1616 = vsub.f32 0.0, %v1590
  %v1617 = vmul.f32 %v1615, %v1589
  %v1618 = vmul.f32 %v1616, %v1590
  %v1619 = vmul.f32 %v1617, 1.442695
  %v1620 = vpow.pop %v1619
  %v1621 = vmul.f32 %v1618, 1.442695
  %v1622 = vpow.pop %v1621
  %v1623 = vmul.f32 %v1613, %v1620
  %v1624 = vmul.f32 %v1614, %v1622
  %v1625 = vsub.f32 1.0, %v1623
  %v1626 = vsub.f32 1.0, %v1624
  %v1627 = vmul.f32 %v1587, %v1625
  %v1628 = vmul.f32 %v1588, %v1626
  %v1629 = vadd.f32 %v1627, 1.0
  %v1630 = vadd.f32 %v1628, 1.0
  %v1631 = vmul.f32 %v1581, %v1629
  %v1632 = vmul.f32 %v1582, %v1630
  %v1633 = vld [vmem:[%s4 + $0x80] sm:$0xf]
  %v1634 = vld [vmem:[%s4 + $0x84] sm:$0xf]
  %v1635 = vld [vmem:[%s4 + $0x88] sm:$0xf]
  %v1636 = vld [vmem:[%s4 + $0x8c] sm:$0xf]
  %v1637 = vld [vmem:[%s4 + $0x90] sm:$0xf]
  %v1638 = vld [vmem:[%s4 + $0x94] sm:$0xf]
  %v1639 = vld [vmem:[%s4 + $0x98] sm:$0xf]
  %v1640 = vld [vmem:[%s4 + $0x9c] sm:$0xf]
  %v1641 = vpack.c.bf16 %v1632, %v1631
  %v1642 = vld [vmem:[%s3 + $0xf] sm:$0x1]
  %v1643 = vlaneseq
  %v1644 = vshrl.u32 %v1643, 7
  %v1645 = vsub.s32 0, %v1644
  %v1646 = vrot.slane %v1642, %v1645
  %v1655 = vunpack.c.l.b16 %v1633
  %v1656 = vunpack.c.l.b16 %v1634
  %v1657 = vunpack.c.l.b16 %v1635
  %v1658 = vunpack.c.l.b16 %v1636
  %v1659 = vunpack.c.l.b16 %v1637
  %v1660 = vunpack.c.l.b16 %v1638
  %v1661 = vunpack.c.l.b16 %v1639
  %v1662 = vunpack.c.l.b16 %v1640
  %v1663 = vpack.c.b16 %v1656, %v1655
  %v1664 = vpack.c.b16 %v1658, %v1657
  %v1665 = vpack.c.b16 %v1660, %v1659
  %v1666 = vpack.c.b16 %v1662, %v1661
  %v1672 = vsel %vm429, %v1641, 0
  %1674 = vmatprep.subr.bf16.mxu0 0
  %1675 = vmatpush1.bf16.msra.mxu0 %v1663
  %1676 = vmatprep.subr.bf16.mxu0 0
  %1677 = vmatpush1.bf16.msra.mxu0 %v1664
  %1678 = vmatprep.subr.bf16.mxu0 0
  %1679 = vmatpush1.bf16.msra.mxu0 %v1665
  %1680 = vmatprep.subr.bf16.mxu0 0
  %1681 = vmatpush1.bf16.msra.mxu0 %v1666
  %1682 = vmatprep.subr.bf16.mxu0 0
  %1683 = vmatpush1.bf16.msra.mxu0 0
  %1684 = vmatprep.subr.bf16.mxu0 0
  %1685 = vmatpush1.bf16.msra.mxu0 0
  %1686 = vmatprep.subr.bf16.mxu0 0
  %1687 = vmatpush1.bf16.msra.mxu0 0
  %1688 = vmatprep.subr.bf16.mxu0 0
  %1689 = vmatpush1.bf16.msra.mxu0 0
  %1690 = vmatprep.subr.bf16.mxu0 0
  %1691 = vmatpush1.bf16.msra.mxu0 0
  %1692 = vmatprep.subr.bf16.mxu0 0
  %1693 = vmatpush1.bf16.msra.mxu0 0
  %1694 = vmatprep.subr.bf16.mxu0 0
  %1695 = vmatpush1.bf16.msra.mxu0 0
  %1696 = vmatprep.subr.bf16.mxu0 0
  %1697 = vmatpush1.bf16.msra.mxu0 0
  %1698 = vmatprep.subr.bf16.mxu0 0
  %1699 = vmatpush1.bf16.msra.mxu0 0
  %1700 = vmatprep.subr.bf16.mxu0 0
  %1701 = vmatpush1.bf16.msra.mxu0 0
  %1702 = vmatprep.subr.bf16.mxu0 0
  %1703 = vmatpush1.bf16.msra.mxu0 0
  %1704 = vmatprep.subr.bf16.mxu0 0
  %1705 = vmatpush1.bf16.msra.mxu0 0
  %1706 = vmatprep.mubr.bf16.mxu0 0
  %1707 = vmatmul.mubr.bf16.gmra.mrb[0].mxu0 %v1672
  %v1708 = vpop.f32.mrb[0].mxu0
  %v1709 = vadd.f32 %v1646, %v1708
  %v1710 = vpop.f32.mrb[0].mxu0
  %v1711 = vpop.f32.mrb[0].mxu0
  %v1712 = vadd.f32 %v1646, %v1711
  %v1713 = vpop.f32.mrb[0].mxu0
  %1714 = vdwg.mxu0
  %v1715 = vadd.f32 %v1513, %v1709
  %v1716 = vadd.f32 %v1514, %v1712
  %v1717 = vld [vmem:[%s3 + $0x10] sm:$0x1]
  %v1718 = vld [vmem:[%s3 + $0x11] sm:$0x1]
  %v1719 = vsel %vm193, %v1715, 0.0
  %1720 = vadd.xlane.f32.xlu0 %v1719
  %v1721 = vpop.xlane.xlu0 %1720
  %v1722 = vsel %vm193, %v1716, 0.0
  %1723 = vadd.xlane.f32.xlu0 %v1722
  %v1724 = vpop.xlane.xlu0 %1723
  %v1725 = vmul.f32 %v1721, %v200
  %v1726 = vmul.f32 %v1724, %v200
  %v1727 = vsub.f32 %v1715, %v1725
  %v1728 = vsub.f32 %v1716, %v1726
  %v1729 = vmul.f32 %v1727, %v1727
  %v1730 = vmul.f32 %v1728, %v1728
  %v1731 = vsel %vm193, %v1729, 0.0
  %1732 = vadd.xlane.f32.xlu0 %v1731
  %v1733 = vpop.xlane.xlu0 %1732
  %v1734 = vsel %vm193, %v1730, 0.0
  %1735 = vadd.xlane.f32.xlu0 %v1734
  %v1736 = vpop.xlane.xlu0 %1735
  %v1737 = vmul.f32 %v1733, %v200
  %v1738 = vmul.f32 %v1736, %v200
  %v1739 = vadd.f32 %v1737, 1e-12
  %v1740 = vadd.f32 %v1738, 1e-12
  %v1741 = vrsqrt.pop %v1739
  %v1742 = vrsqrt.pop %v1740
  %v1743 = vmul.f32 %v1727, %v1741
  %v1744 = vmul.f32 %v1728, %v1742
  %v1745 = vlaneseq
  %v1746 = vshrl.u32 %v1745, 7
  %v1747 = vsub.s32 0, %v1746
  %v1748 = vrot.slane %v1717, %v1747
  %v1749 = vmul.f32 %v1743, %v1748
  %v1750 = vmul.f32 %v1744, %v1748
  %v1751 = vlaneseq
  %v1752 = vshrl.u32 %v1751, 7
  %v1753 = vsub.s32 0, %v1752
  %v1754 = vrot.slane %v1718, %v1753
  %v1755 = vadd.f32 %v1749, %v1754
  %v1756 = vadd.f32 %v1750, %v1754
  %v1757 = vld [vmem:[%s4 + $0xa0] sm:$0xf]
  %v1758 = vld [vmem:[%s4 + $0xa4] sm:$0xf]
  %v1759 = vld [vmem:[%s4 + $0xa8] sm:$0xf]
  %v1760 = vld [vmem:[%s4 + $0xac] sm:$0xf]
  %v1761 = vpack.c.bf16 %v1756, %v1755
  %v1762 = vld [vmem:[%s3 + $0x12] sm:$0x1]
  %v1763 = vlaneseq
  %v1764 = vshrl.u32 %v1763, 7
  %v1765 = vsub.s32 0, %v1764
  %v1766 = vrot.slane %v1762, %v1765
  %v1771 = vunpack.c.l.b16 %v1757
  %v1772 = vunpack.c.l.b16 %v1758
  %v1773 = vunpack.c.l.b16 %v1759
  %v1774 = vunpack.c.l.b16 %v1760
  %v1775 = vpack.c.b16 %v1772, %v1771
  %v1776 = vpack.c.b16 %v1774, %v1773
  %v1780 = vsel %vm193, %v1761, 0
  %1782 = vmatprep.subr.bf16.mxu0 0
  %1783 = vmatpush1.bf16.msra.mxu0 %v1775
  %1784 = vmatprep.subr.bf16.mxu0 0
  %1785 = vmatpush1.bf16.msra.mxu0 %v1776
  %1786 = vmatprep.subr.bf16.mxu0 0
  %1787 = vmatpush1.bf16.msra.mxu0 0
  %1788 = vmatprep.subr.bf16.mxu0 0
  %1789 = vmatpush1.bf16.msra.mxu0 0
  %1790 = vmatprep.subr.bf16.mxu0 0
  %1791 = vmatpush1.bf16.msra.mxu0 0
  %1792 = vmatprep.subr.bf16.mxu0 0
  %1793 = vmatpush1.bf16.msra.mxu0 0
  %1794 = vmatprep.subr.bf16.mxu0 0
  %1795 = vmatpush1.bf16.msra.mxu0 0
  %1796 = vmatprep.subr.bf16.mxu0 0
  %1797 = vmatpush1.bf16.msra.mxu0 0
  %1798 = vmatprep.subr.bf16.mxu0 0
  %1799 = vmatpush1.bf16.msra.mxu0 0
  %1800 = vmatprep.subr.bf16.mxu0 0
  %1801 = vmatpush1.bf16.msra.mxu0 0
  %1802 = vmatprep.subr.bf16.mxu0 0
  %1803 = vmatpush1.bf16.msra.mxu0 0
  %1804 = vmatprep.subr.bf16.mxu0 0
  %1805 = vmatpush1.bf16.msra.mxu0 0
  %1806 = vmatprep.subr.bf16.mxu0 0
  %1807 = vmatpush1.bf16.msra.mxu0 0
  %1808 = vmatprep.subr.bf16.mxu0 0
  %1809 = vmatpush1.bf16.msra.mxu0 0
  %1810 = vmatprep.subr.bf16.mxu0 0
  %1811 = vmatpush1.bf16.msra.mxu0 0
  %1812 = vmatprep.subr.bf16.mxu0 0
  %1813 = vmatpush1.bf16.msra.mxu0 0
  %1814 = vmatprep.mubr.bf16.mxu0 0
  %1815 = vmatmul.mubr.bf16.gmra.mrb[0].mxu0 %v1780
  %v1816 = vpop.f32.mrb[0].mxu0
  %v1817 = vadd.f32 %v1766, %v1816
  %v1818 = vpop.f32.mrb[0].mxu0
  %v1819 = vpop.f32.mrb[0].mxu0
  %v1820 = vadd.f32 %v1766, %v1819
  %v1821 = vpop.f32.mrb[0].mxu0
  %1822 = vdwg.mxu0
  %v1823 = vtanh.pop %v1817
  %v1824 = vtanh.pop %v1820
  %v1825 = vld [vmem:[%s3 + $0x13] sm:$0x1]
  %v1826 = vlaneseq
  %v1827 = vshrl.u32 %v1826, 7
  %v1828 = vsub.s32 0, %v1827
  %v1829 = vrot.slane %v1825, %v1828
  %v1830 = vmul.f32 %v1823, %v1829
  %v1831 = vmul.f32 %v1824, %v1829
  %v1832 = vsel %vm193, %v1830, 0.0
  %1833 = vadd.xlane.f32.xlu0 %v1832
  %v1834 = vpop.xlane.xlu0 %1833
  %v1835 = vsel %vm193, %v1831, 0.0
  %1836 = vadd.xlane.f32.xlu0 %v1835
  %v1837 = vpop.xlane.xlu0 %1836
  %v1838 = vld [vmem:[%s3 + $0x14] sm:$0x1]
  %v1839 = vlaneseq
  %v1840 = vshrl.u32 %v1839, 7
  %v1841 = vsub.s32 0, %v1840
  %v1842 = vrot.slane %v1838, %v1841
  %v1843 = vadd.f32 %v1834, %v1842
  %v1844 = vadd.f32 %v1837, %v1842
  %v1845 = vxor.u32 %v1843, 2147483648
  %v1846 = vxor.u32 %v1844, 2147483648
  %v1847 = vmul.f32 %v1845, 1.442695
  %v1848 = vpow.pop %v1847
  %v1849 = vmul.f32 %v1846, 1.442695
  %v1850 = vpow.pop %v1849
  %v1851 = vadd.f32 %v1848, 1.0
  %v1852 = vadd.f32 %v1850, 1.0
  %v1853 = vrcp.pop %v1851
  %v1854 = vmul.f32 1.0, %v1853
  %v1855 = vrcp.pop %v1852
  %v1856 = vmul.f32 1.0, %v1855
  %1858 = vset.pattern.permute.xlu0 0
  %1859 = vperm.xlu0 %1858, %v1854
  %v1860 = vpop.permute.xlu0 %1859
  %1863 = vset.pattern.permute.xlu0 0
  %1864 = vperm.xlu0 %1863, %v1856
  %v1865 = vpop.permute.xlu0 %1864
  %1867 = vst [vmem:[%s5] sm:$0xff] %v1860
  %1868 = vst [vmem:[%s5 + $0x8] sm:$0xff] %v1865
  // Predicated region
  $region22: #{sentence_similarity_forward.1} parent=0 // pred_check
    _
  $region23: #{sentence_similarity_forward.1} parent=0 // pred_check_branch
    %1870 = sbr.rel (0) target = $region25
  $region24: #{sentence_similarity_forward.1} parent=0 // pred_region
    _
  $region25: #{sentence_similarity_forward.1} parent=0 // pred_fallthru
    _
  // Predicated region
  $region26: #{sentence_similarity_forward.1} parent=0 // pred_check
    _
  $region27: #{sentence_similarity_forward.1} parent=0 // pred_check_branch
    %1872 = sbr.rel (0) target = $region29
  $region28: #{sentence_similarity_forward.1} parent=0 // pred_region
    _
  $region29: #{sentence_similarity_forward.1} parent=0 // pred_fallthru
    _

</llo_original>
